<compile_context>
chip_gen: v7x
topology: tpu7x:2x2x1
jax: 0.10.0
libtpu: 0.0.40
codegen_flags: <defaults>
</compile_context>

<pallas_src>
import math
import numpy as np
import jax
import jax.numpy as jnp
from jax.experimental import pallas as pl
from jax.experimental.pallas import tpu as pltpu


# -------------------------------------------------------------------------
# Bicubic interpolation matrix (PyTorch upsample_bicubic2d semantics,
# align_corners=False half-pixel mapping, A=-0.75, replicate-clamped taps).
# -------------------------------------------------------------------------
def _cubic_conv1(x, A):
    return ((A + 2.0) * x - (A + 3.0)) * x * x + 1.0


def _cubic_conv2(x, A):
    return ((A * x - 5.0 * A) * x + 8.0 * A) * x - 4.0 * A


def bicubic_matrix(in_size, out_size, scale, A=-0.75, dtype=np.float32):
    """Dense (out_size, in_size) bicubic interpolation matrix."""
    W = np.zeros((out_size, in_size), dtype=np.float64)
    for i in range(out_size):
        src = (i + 0.5) * scale - 0.5
        i0 = int(np.floor(src))
        t = src - i0
        coeffs = (
            _cubic_conv2(t + 1.0, A),
            _cubic_conv1(t, A),
            _cubic_conv1(1.0 - t, A),
            _cubic_conv2(2.0 - t, A),
        )
        for k in range(4):
            idx = min(max(i0 - 1 + k, 0), in_size - 1)  # replicate-clamp
            W[i, idx] += coeffs[k]
    return W.astype(dtype)


# -------------------------------------------------------------------------
# Pallas kernel: two MXU matmuls on a block of TB row-stacked images.
# -------------------------------------------------------------------------
def _interp_kernel(x_ref, wwt_ref, whbd_ref, o_ref):
    # x_ref:    (TB*H, W)         TB images stacked along sublanes (natural NCHW rows)
    # wwt_ref:  (W, W_out)        width interpolation matrix, transposed
    # whbd_ref: (TB*H_out, TB*H)  block-diagonal height interpolation matrix
    # o_ref:    (TB*H_out, W_out)
    x = x_ref[...].astype(jnp.float32)
    t = jnp.dot(x, wwt_ref[...],
                preferred_element_type=jnp.float32,
                precision=jax.lax.Precision.HIGHEST)        # width pass
    out = jnp.dot(whbd_ref[...], t,
                  preferred_element_type=jnp.float32,
                  precision=jax.lax.Precision.HIGHEST)      # per-image height pass
    o_ref[...] = out.astype(o_ref.dtype)


# -------------------------------------------------------------------------
# Tiling / VMEM-budget selection.
# -------------------------------------------------------------------------
def _pad_up(v, m):
    return ((v + m - 1) // m) * m


def _vmem_limit_bytes():
    """Generation-aware VMEM limit: ~56 MiB on 64-MiB parts (v7x),
    ~100 MiB on 128-MiB parts (v5e / v6e)."""
    cap = 64 * 1024 * 1024  # conservative default: assume the smallest chip
    try:
        cap = int(pltpu.get_tpu_info().vmem_capacity_bytes)
    except Exception:
        pass
    if cap <= 64 * 1024 * 1024:
        return 56 * 1024 * 1024
    return 100 * 1024 * 1024


def _vmem_bytes(tb, H, W, H_out, W_out, itemsize=4):
    """Conservative per-step VMEM footprint for a group of `tb` images
    (lane/sublane padded; input counted at depth-3 buffering, weights single)."""
    w_pad, wo_pad = _pad_up(W, 128), _pad_up(W_out, 128)
    rin, rout = _pad_up(tb * H, 8), _pad_up(tb * H_out, 8)
    blocks = (3 * rin * w_pad + 2 * rout * wo_pad) * itemsize          # pipelined in/out
    interm = rin * wo_pad * itemsize                                   # f32 width-pass result
    weights = (_pad_up(W, 8) * wo_pad + rout * _pad_up(tb * H, 128)) * itemsize  # Buffered(1)
    return blocks + interm + weights


def _choose_tb(NC, H, W, H_out, W_out, budget):
    """Images packed per grid step.

    Constraints: tb divides NC; blocks are sublane-aligned (tb*H, tb*H_out
    multiples of 8) or full-extent (tb == NC); fits the VMEM budget.
    Preference (per perf review): >=2 grid steps (megacore / pipelining),
    >=4 steps, block-diagonal K = tb*H <= 256 (bounded MXU zero-work),
    longer contiguous DMA blocks (up to 32 KiB), then the smallest tb.
    """
    cands = [d for d in range(1, NC + 1)
             if NC % d == 0
             and (((d * H) % 8 == 0 and (d * H_out) % 8 == 0) or d == NC)]
    fit = [d for d in cands if _vmem_bytes(d, H, W, H_out, W_out) <= budget]
    cands = fit if fit else [min(cands)]   # graceful fallback: smallest valid block

    def score(d):
        g = NC // d
        return (g >= 2, g >= 4, d * H <= 256, min(d * H * W * 4, 32 * 1024), -d)

    tb = max(cands, key=score)
    return tb, NC // tb


# -------------------------------------------------------------------------
# Public wrapper.
# -------------------------------------------------------------------------
def interpolate_bicubic(x, scale_factor=2):
    """Pallas-TPU equivalent of
    torch.nn.functional.interpolate(x, scale_factor=s, mode='bicubic')
    (align_corners=False, recompute_scale_factor=False).  x: (N, C, H, W)."""
    N, C, H, W = x.shape
    H_out = int(math.floor(H * scale_factor))
    W_out = int(math.floor(W * scale_factor))
    NC = N * C

    vmem_limit = _vmem_limit_bytes()
    budget = vmem_limit - 16 * 1024 * 1024      # headroom for Mosaic internal scratch
    TB, G = _choose_tb(NC, H, W, H_out, W_out, budget)

    # PyTorch (recompute_scale_factor=False) maps coordinates with 1/scale_factor.
    inv_scale = 1.0 / float(scale_factor)
    wh = bicubic_matrix(H, H_out, inv_scale)                       # (H_out, H)
    ww = bicubic_matrix(W, W_out, inv_scale)                       # (W_out, W)
    wwt = jnp.asarray(ww.T)                                        # (W, W_out)
    # Block-diagonal Wh: the height pass over TB stacked images is ONE matmul
    # whose result stays in natural (image-major) row order.
    whbd = jnp.asarray(np.kron(np.eye(TB, dtype=np.float32), wh))  # (TB*H_out, TB*H)

    # Free reshapes only -- no transposes anywhere on the HBM-bound path.
    x2d = x.reshape(NC * H, W)

    in_block_bytes = TB * H * W * x.dtype.itemsize
    # Deeper input buffering when blocks are tiny and the grid is long.
    if G >= 8 and in_block_bytes <= 64 * 1024:
        x_spec = pl.BlockSpec((TB * H, W), lambda g: (g, 0),
                              pipeline_mode=pl.Buffered(3))
    else:
        x_spec = pl.BlockSpec((TB * H, W), lambda g: (g, 0))

    flops = 2 * NC * H * W * W_out + 2 * G * (TB * H_out) * (TB * H) * W_out
    bytes_accessed = (x.dtype.itemsize * (NC * H * W + NC * H_out * W_out)
                      + 4 * (int(wwt.size) + int(whbd.size)))

    out2d = pl.pallas_call(
        _interp_kernel,
        out_shape=jax.ShapeDtypeStruct((NC * H_out, W_out), x.dtype),
        grid_spec=pltpu.PrefetchScalarGridSpec(
            num_scalar_prefetch=0,
            grid=(G,),
            in_specs=[
                x_spec,
                # Constant-index weights: single-buffered (no wasted VMEM / re-DMA).
                pl.BlockSpec((W, W_out), lambda g: (0, 0),
                             pipeline_mode=pl.Buffered(1)),
                pl.BlockSpec((TB * H_out, TB * H), lambda g: (0, 0),
                             pipeline_mode=pl.Buffered(1)),
            ],
            out_specs=pl.BlockSpec((TB * H_out, W_out), lambda g: (g, 0)),
        ),
        compiler_params=pltpu.CompilerParams(
            dimension_semantics=("parallel",),
            vmem_limit_bytes=vmem_limit,
        ),
        cost_estimate=pl.CostEstimate(
            flops=int(flops), bytes_accessed=int(bytes_accessed), transcendentals=0
        ),
    )(x2d, wwt, whbd)

    # Free reshape back to NCHW (rows are already in natural image-major order).
    return out2d.reshape(N, C, H_out, W_out)


if __name__ == "__main__":
    key = jax.random.PRNGKey(0)
    x = jax.random.normal(key, (2, 4, 16, 16), dtype=jnp.float32)

    out = jax.block_until_ready(interpolate_bicubic(x, scale_factor=2))
    assert out.shape == (2, 4, 32, 32), out.shape

    # Reference: the same separable bicubic matrices applied via numpy einsum.
    N, C, H, W = x.shape
    s = 2
    H_out, W_out = H * s, W * s
    wh_np = bicubic_matrix(H, H_out, 1.0 / s)
    ww_np = bicubic_matrix(W, W_out, 1.0 / s)
    ref = np.einsum(
        "oh,bhw,kw->bok", wh_np, np.asarray(x).reshape(N * C, H, W), ww_np
    )
    np.testing.assert_allclose(
        np.asarray(out).reshape(N * C, H_out, W_out), ref, rtol=1e-4, atol=1e-4
    )

    # Bicubic weights sum to 1 per output pixel -> constants map to constants.
    const = jnp.full((1, 1, 16, 16), 3.5, dtype=jnp.float32)
    out_c = jax.block_until_ready(interpolate_bicubic(const, scale_factor=2))
    assert np.allclose(np.asarray(out_c), 3.5, atol=1e-5)

    print("KERNEL_OK")
</pallas_src>

<mosaic_0001>
module attributes {stable_mosaic.version = 11 : i64} {
  func.func @_interp_kernel(%arg0: i32, %arg1: memref<32x16xf32, #tpu.memory_space<vmem>>, %arg2: memref<16x32xf32, #tpu.memory_space<vmem>>, %arg3: memref<64x32xf32, #tpu.memory_space<vmem>>, %arg4: memref<64x32xf32, #tpu.memory_space<vmem>>) attributes {dimension_semantics = [#tpu.dimension_semantics<parallel>], iteration_bounds = array<i64: 4>, scalar_prefetch = 0 : i64, scratch_operands = 0 : i64, tpu.core_type = #tpu.core_type<tc>, window_params = [{transform_indices = @transform_0, window_bounds = array<i64: 32, 16>}, {pipeline_mode = #tpu.pipeline_mode<synchronous>, transform_indices = @transform_1, window_bounds = array<i64: 16, 32>}, {pipeline_mode = #tpu.pipeline_mode<synchronous>, transform_indices = @transform_2, window_bounds = array<i64: 64, 32>}, {transform_indices = @transform_3, window_bounds = array<i64: 64, 32>}]} {
    %c0 = arith.constant 0 : index
    %c0_0 = arith.constant 0 : index
    %0 = vector.load %arg1[%c0, %c0_0] : memref<32x16xf32, #tpu.memory_space<vmem>>, vector<32x16xf32>
    %c0_1 = arith.constant 0 : index
    %c0_2 = arith.constant 0 : index
    %1 = vector.load %arg2[%c0_1, %c0_2] : memref<16x32xf32, #tpu.memory_space<vmem>>, vector<16x32xf32>
    %cst = arith.constant dense<0.000000e+00> : vector<32x32xf32>
    %2 = tpu.matmul %0, %1, %cst {dimension_numbers = #tpu.dot_dimension_numbers<[1], [0], [0], [1], [0, 0, 1, 1], [], []>, precision = #tpu.contract_precision<fp32>} : vector<32x16xf32>, vector<16x32xf32>, vector<32x32xf32> -> vector<32x32xf32>
    %c0_3 = arith.constant 0 : index
    %c0_4 = arith.constant 0 : index
    %3 = vector.load %arg3[%c0_3, %c0_4] : memref<64x32xf32, #tpu.memory_space<vmem>>, vector<64x32xf32>
    %cst_5 = arith.constant dense<0.000000e+00> : vector<64x32xf32>
    %4 = tpu.matmul %3, %2, %cst_5 {dimension_numbers = #tpu.dot_dimension_numbers<[1], [0], [0], [1], [0, 0, 1, 1], [], []>, precision = #tpu.contract_precision<fp32>} : vector<64x32xf32>, vector<32x32xf32>, vector<64x32xf32> -> vector<64x32xf32>
    %c0_6 = arith.constant 0 : index
    %c0_7 = arith.constant 0 : index
    %5 = vector.load %arg4[%c0_6, %c0_7] : memref<64x32xf32, #tpu.memory_space<vmem>>, vector<64x32xf32>
    tpu.vector_store %arg4[%c0_6, %c0_7], %4 {strides = array<i32>} : memref<64x32xf32, #tpu.memory_space<vmem>>, vector<64x32xf32>,
    return
  }
  func.func @transform_0(%arg0: i32) -> (i32, i32) {
    %c0_i32 = arith.constant 0 : i32
    %c0_i32_0 = arith.constant 0 : i32
    return %arg0, %c0_i32 : i32, i32
  }
  func.func @transform_1(%arg0: i32) -> (i32, i32) {
    %c0_i32 = arith.constant 0 : i32
    %c0_i32_0 = arith.constant 0 : i32
    %c0_i32_1 = arith.constant 0 : i32
    return %c0_i32, %c0_i32_0 : i32, i32
  }
  func.func @transform_2(%arg0: i32) -> (i32, i32) {
    %c0_i32 = arith.constant 0 : i32
    %c0_i32_0 = arith.constant 0 : i32
    %c0_i32_1 = arith.constant 0 : i32
    return %c0_i32, %c0_i32_0 : i32, i32
  }
  func.func @transform_3(%arg0: i32) -> (i32, i32) {
    %c0_i32 = arith.constant 0 : i32
    %c0_i32_0 = arith.constant 0 : i32
    return %arg0, %c0_i32 : i32, i32
  }
}

</mosaic_0001>

<llo_original>
// kernel: tpu_custom_call.1
$region0: #{tpu_custom_call.1}
  #allocation0 [shape = 'u32[]', space=smem, size = 0x4, offset = 0x4, fixed_abs, tag = 'smem constant byte address 0x4 - core index']
  #allocation1 [shape = 'u32[144,128]{1,0:T(1,128)}', space=vmem, size = 0x12000, scoped, tag = 'internal scratch']
  %s0 = inlined_call_operand.vmem [shape: f32[128,16], index: 0, kind: input, shape index: {}]
  %s1 = inlined_call_operand.vmem [shape: f32[16,32], index: 1, kind: input, shape index: {}]
  %s2 = inlined_call_operand.vmem [shape: f32[64,32], index: 2, kind: input, shape index: {}]
  %s3 = inlined_call_operand.vmem [shape: f32[256,32], index: 3, kind: output, shape index: {}]
  %s4 = sld [smem:[#allocation0]]
  $region45: #{tpu_custom_call.1} parent=0
    _
  %s6 = ssub.s32 1, %s4
  %s7 = scalar_select 0, %s6, %s4
  loop: start=0, step=1, limit=6
  $region2: #{tpu_custom_call.1} parent=0 // loop_pre_header
    _
  $region3: #{tpu_custom_call.1} parent=0 // loop_header
    %s9 = sphi 0, %s13
    %p10 = scmp.ge.s32.totalorder %s9, 6
    %s19 = sphi 0, %s21
    %s22 = sphi 0, %s19
    %s23 = sphi 0, %s22
    %s39 = sphi 0, %s23
    %s43 = sphi 0, %s43
    %s45 = sphi 0, %s43
    %s46 = sphi 0, %s45
    %s60 = sphi 0, %s46
    %s64 = sphi 0, %s64
    %s66 = sphi 0, %s64
    %s67 = sphi 0, %s66
    %s81 = sphi 0, %s67
    %s87 = sphi 0, %s89
    %s90 = sphi 0, %s87
    %s91 = sphi 0, %s90
    %s107 = sphi 0, %s91
  $region4: #{tpu_custom_call.1} parent=0 // loop_header_branch
    %12 = sbr.rel (%p10) target = $region8
  $region5: #{tpu_custom_call.1} parent=0 // loop_body
    %s14 = ssub.s32 %s9, 1
    %s15 = ssub.s32 %s9, 2
    %s16 = sadd.s32 %s9, 1
    %s17 = ssub.s32 %s9, %s16
    %p18 = scmp.eq.s32.totalorder %s17, 0
    %s20 = sadd.s32 %s19, 1
    %s21 = scalar_select %p18, %s19, %s20
    %p24 = pneg %p18
    %p25 = scmp.eq.s32.totalorder %s9, 3
    %p26 = por %p24, %p25
    %p27 = scmp.ne.s32.totalorder %s19, %s22
    %p28 = scmp.eq.s32.totalorder %s9, 0
    %p29 = por %p27, %p28
    %p30 = scmp.ne.s32.totalorder %s19, %s22
    %p31 = scmp.eq.s32.totalorder %s14, 3
    %p32 = por %p30, %p31
    %p33 = scmp.ne.s32.totalorder %s22, %s23
    %p34 = scmp.eq.s32.totalorder %s14, 0
    %p35 = por %p33, %p34
    %p36 = scmp.ne.s32.totalorder %s22, %s23
    %p37 = scmp.eq.s32.totalorder %s15, 3
    %p38 = por %p36, %p37
    %p40 = scmp.ne.s32.totalorder %s23, %s39
    %p41 = scmp.eq.s32.totalorder %s15, 0
    %p42 = por %p40, %p41
    %s44 = sadd.s32 %s43, 1
    %p47 = scmp.eq.s32.totalorder %s9, 3
    %p48 = scmp.ne.s32.totalorder %s43, %s45
    %p49 = scmp.eq.s32.totalorder %s9, 0
    %p50 = por %p48, %p49
    %p51 = scmp.ne.s32.totalorder %s43, %s45
    %p52 = scmp.eq.s32.totalorder %s14, 3
    %p53 = por %p51, %p52
    %p54 = scmp.ne.s32.totalorder %s45, %s46
    %p55 = scmp.eq.s32.totalorder %s14, 0
    %p56 = por %p54, %p55
    %p57 = scmp.ne.s32.totalorder %s45, %s46
    %p58 = scmp.eq.s32.totalorder %s15, 3
    %p59 = por %p57, %p58
    %p61 = scmp.ne.s32.totalorder %s46, %s60
    %p62 = scmp.eq.s32.totalorder %s15, 0
    %p63 = por %p61, %p62
    %s65 = sadd.s32 %s64, 1
    %p68 = scmp.eq.s32.totalorder %s9, 3
    %p69 = scmp.ne.s32.totalorder %s64, %s66
    %p70 = scmp.eq.s32.totalorder %s9, 0
    %p71 = por %p69, %p70
    %p72 = scmp.ne.s32.totalorder %s64, %s66
    %p73 = scmp.eq.s32.totalorder %s14, 3
    %p74 = por %p72, %p73
    %p75 = scmp.ne.s32.totalorder %s66, %s67
    %p76 = scmp.eq.s32.totalorder %s14, 0
    %p77 = por %p75, %p76
    %p78 = scmp.ne.s32.totalorder %s66, %s67
    %p79 = scmp.eq.s32.totalorder %s15, 3
    %p80 = por %p78, %p79
    %p82 = scmp.ne.s32.totalorder %s67, %s81
    %p83 = scmp.eq.s32.totalorder %s15, 0
    %p84 = por %p82, %p83
    %s85 = ssub.s32 %s9, %s16
    %p86 = scmp.eq.s32.totalorder %s85, 0
    %s88 = sadd.s32 %s87, 1
    %s89 = scalar_select %p86, %s87, %s88
    %p92 = pneg %p86
    %p93 = scmp.eq.s32.totalorder %s9, 3
    %p94 = por %p92, %p93
    %p95 = scmp.ne.s32.totalorder %s87, %s90
    %p96 = scmp.eq.s32.totalorder %s9, 0
    %p97 = por %p95, %p96
    %p98 = scmp.ne.s32.totalorder %s87, %s90
    %p99 = scmp.eq.s32.totalorder %s14, 3
    %p100 = por %p98, %p99
    %p101 = scmp.ne.s32.totalorder %s90, %s91
    %p102 = scmp.eq.s32.totalorder %s14, 0
    %p103 = por %p101, %p102
    %p104 = scmp.ne.s32.totalorder %s90, %s91
    %p105 = scmp.eq.s32.totalorder %s15, 3
    %p106 = por %p104, %p105
    %p108 = scmp.ne.s32.totalorder %s91, %s107
    %p109 = scmp.eq.s32.totalorder %s15, 0
    %p110 = por %p108, %p109
    %p111 = scmp.le.s32.totalorder 1, %s9
    %p112 = scmp.lt.s32.totalorder %s9, 5
    %p113 = pnand %p111, %p112
    %p114 = pneg %p113
    // Predicated region
    $region9: #{tpu_custom_call.1} parent=5 // pred_check
      _
    $region10: #{tpu_custom_call.1} parent=5 // pred_check_branch
      %116 = sbr.rel (%p113) target = $region12
    $region11: #{tpu_custom_call.1} parent=5 // pred_region
      %s117 = ssub.s32 %s9, 1
      // Predicated region
      $region13: #{tpu_custom_call.1} parent=11 // pred_check
        %p118 = pneg %p56
      $region14: #{tpu_custom_call.1} parent=11 // pred_check_branch
        %120 = sbr.rel (%p118) target = $region16
      $region15: #{tpu_custom_call.1} parent=11 // pred_region
        _
      $region16: #{tpu_custom_call.1} parent=11 // pred_fallthru
        _
      // Predicated region
      $region17: #{tpu_custom_call.1} parent=11 // pred_check
        %p121 = pneg %p77
      $region18: #{tpu_custom_call.1} parent=11 // pred_check_branch
        %123 = sbr.rel (%p121) target = $region20
      $region19: #{tpu_custom_call.1} parent=11 // pred_region
        _
      $region20: #{tpu_custom_call.1} parent=11 // pred_fallthru
        _
    $region12: #{tpu_custom_call.1} parent=5 // pred_fallthru
      _
    %p124 = scmp.lt.s32.totalorder %s9, 4
    // Predicated region
    $region21: #{tpu_custom_call.1} parent=5 // pred_check
      %p125 = pneg %p124
    $region22: #{tpu_custom_call.1} parent=5 // pred_check_branch
      %127 = sbr.rel (%p125) target = $region24
    $region23: #{tpu_custom_call.1} parent=5 // pred_region
      // Predicated region
      $region25: #{tpu_custom_call.1} parent=23 // pred_check
        %p128 = pneg %p29
      $region26: #{tpu_custom_call.1} parent=23 // pred_check_branch
        %130 = sbr.rel (%p128) target = $region28
      $region27: #{tpu_custom_call.1} parent=23 // pred_region
        %s131 = smul.u32 4, %s9
        %p132 = scmp.lt.s32.totalorder %s131, 15
        %s133 = scalar_select %p132, %s131, 15
        %s134 = smul.addr %s133, 8
        %s135 = scalar_lea.vmem %s0, %s134
        %s136 = smul.u32 4, %s9
      $region28: #{tpu_custom_call.1} parent=23 // pred_fallthru
        _
    $region24: #{tpu_custom_call.1} parent=5 // pred_fallthru
      _
    %p137 = scmp.le.s32.totalorder 1, %s9
    %p138 = scmp.lt.s32.totalorder %s9, 5
    %p139 = pnand %p137, %p138
    %p140 = pneg %p139
    // Predicated region
    $region29: #{tpu_custom_call.1} parent=5 // pred_check
      _
    $region30: #{tpu_custom_call.1} parent=5 // pred_check_branch
      %142 = sbr.rel (%p139) target = $region32
    $region31: #{tpu_custom_call.1} parent=5 // pred_region
      %s143 = ssub.s32 %s9, 1
      %s144 = smul.u32 4, %s14
      %p145 = scmp.lt.s32.totalorder %s144, 15
      %s146 = scalar_select %p145, %s144, 15
      %s147 = smul.addr %s146, 8
      %s148 = scalar_lea.vmem %s0, %s147
      %p149 = pneg %p35
      %p150 = pneg %p32
      %p151 = pneg %p56
      %p152 = pneg %p53
      %p153 = pneg %p77
      %p154 = pneg %p74
      %p155 = pneg %p103
      %p156 = pneg %p100
      %s157 = smul.u32 8, %s14
      %p158 = scmp.lt.s32.totalorder %s157, 31
      %s159 = scalar_select %p158, %s157, 31
      %s160 = smul.addr %s159, 8
      %s161 = scalar_lea.vmem %s3, %s160
      %s162 = smul.u32 4, %s14
      %p163 = scmp.lt.s32.totalorder %s162, 15
      %s164 = scalar_select %p163, %s162, 15
      %s165 = smul.addr %s164, 8
      %s166 = scalar_lea.vmem %s0, %s165
      %s167 = smul.u32 4, %s14
      %s168 = smul.u32 8, %s14
      %p169 = scmp.lt.s32.totalorder %s168, 31
      %s170 = scalar_select %p169, %s168, 31
      %s171 = smul.addr %s170, 8
      %s172 = scalar_lea.vmem %s3, %s171
      %s173 = smul.u32 8, %s14
      %v174 = vld [vmem:[%s166] sm:$0xff]
      %v175 = vld [vmem:[%s166 + $0x8] sm:$0xff]
      %v176 = vld [vmem:[%s166 + $0x10] sm:$0xff]
      %v177 = vld [vmem:[%s166 + $0x18] sm:$0xff]
      %v178 = vld [vmem:[%s1] sm:$0xff]
      %v179 = vld [vmem:[%s1 + $0x8] sm:$0xff]
      %vm180 = vcmask 130048
      %v182 = vsel %vm180, %v174, 0
      %v185 = vsel %vm180, %v175, 0
      %v188 = vsel %vm180, %v176, 0
      %v191 = vsel %vm180, %v177, 0
      %193 = vmatprep.subr.mxu0 0.0
      %v194 = vand.u32 %v178, 4294901760
      %195 = vmatpush1.msra.mxu0 %v194
      %196 = vmatprep.subr.mxu0 0.0
      %v197 = vand.u32 %v179, 4294901760
      %198 = vmatpush1.msra.mxu0 %v197
      %199 = vmatprep.subr.mxu0 0.0
      %200 = vmatpush1.msra.mxu0 0.0
      %201 = vmatprep.subr.mxu0 0.0
      %202 = vmatpush1.msra.mxu0 0.0
      %203 = vmatprep.subr.mxu0 0.0
      %204 = vmatpush1.msra.mxu0 0.0
      %205 = vmatprep.subr.mxu0 0.0
      %206 = vmatpush1.msra.mxu0 0.0
      %207 = vmatprep.subr.mxu0 0.0
      %208 = vmatpush1.msra.mxu0 0.0
      %209 = vmatprep.subr.mxu0 0.0
      %210 = vmatpush1.msra.mxu0 0.0
      %211 = vmatprep.subr.mxu0 0.0
      %212 = vmatpush1.msra.mxu0 0.0
      %213 = vmatprep.subr.mxu0 0.0
      %214 = vmatpush1.msra.mxu0 0.0
      %215 = vmatprep.subr.mxu0 0.0
      %216 = vmatpush1.msra.mxu0 0.0
      %217 = vmatprep.subr.mxu0 0.0
      %218 = vmatpush1.msra.mxu0 0.0
      %219 = vmatprep.subr.mxu0 0.0
      %220 = vmatpush1.msra.mxu0 0.0
      %221 = vmatprep.subr.mxu0 0.0
      %222 = vmatpush1.msra.mxu0 0.0
      %223 = vmatprep.subr.mxu0 0.0
      %224 = vmatpush1.msra.mxu0 0.0
      %225 = vmatprep.subr.mxu0 0.0
      %226 = vmatpush1.msra.mxu0 0.0
      %227 = vmatprep.subr.mxu0 0.0
      %228 = vmatpush1.msra.mxu0 0.0
      %229 = vmatprep.subr.mxu0 0.0
      %230 = vmatpush1.msra.mxu0 0.0
      %231 = vmatprep.subr.mxu0 0.0
      %232 = vmatpush1.msra.mxu0 0.0
      %233 = vmatprep.subr.mxu0 0.0
      %234 = vmatpush1.msra.mxu0 0.0
      %235 = vmatprep.subr.mxu0 0.0
      %236 = vmatpush1.msra.mxu0 0.0
      %237 = vmatprep.subr.mxu0 0.0
      %238 = vmatpush1.msra.mxu0 0.0
      %239 = vmatprep.subr.mxu0 0.0
      %240 = vmatpush1.msra.mxu0 0.0
      %241 = vmatprep.subr.mxu0 0.0
      %242 = vmatpush1.msra.mxu0 0.0
      %243 = vmatprep.subr.mxu0 0.0
      %244 = vmatpush1.msra.mxu0 0.0
      %245 = vmatprep.subr.mxu0 0.0
      %246 = vmatpush1.msra.mxu0 0.0
      %247 = vmatprep.subr.mxu0 0.0
      %248 = vmatpush1.msra.mxu0 0.0
      %249 = vmatprep.subr.mxu0 0.0
      %250 = vmatpush1.msra.mxu0 0.0
      %251 = vmatprep.subr.mxu0 0.0
      %252 = vmatpush1.msra.mxu0 0.0
      %253 = vmatprep.subr.mxu0 0.0
      %254 = vmatpush1.msra.mxu0 0.0
      %255 = vmatprep.subr.mxu0 0.0
      %256 = vmatpush1.msra.mxu0 0.0
      %257 = vmatprep.subr.mxu0 0.0
      %258 = vmatpush1.msra.mxu0 0.0
      %259 = vmatprep.mubr.f32.mxu0 0.0
      %v260 = vand.u32 %v182, 4294901760
      %v261 = vsub.f32 %v182, %v260
      %v262 = vand.u32 %v261, 4294901760
      %v263 = vsub.f32 %v261, %v262
      %v264 = vand.u32 %v263, 4294901760
      %265 = vmatmul.mubr.f32.gmra.mrb[0].mxu0 %v264
      %v266 = vpop.f32.mrb[0].mxu0
      %v267 = vadd.f32 0.0, %v266
      %v268 = vpop.f32.mrb[0].mxu0
      %269 = vmatprep.mubr.f32.mxu0 0.0
      %v270 = vand.u32 %v185, 4294901760
      %v271 = vsub.f32 %v185, %v270
      %v272 = vand.u32 %v271, 4294901760
      %v273 = vsub.f32 %v271, %v272
      %v274 = vand.u32 %v273, 4294901760
      %275 = vmatmul.mubr.f32.gmra.mrb[0].mxu0 %v274
      %v276 = vpop.f32.mrb[0].mxu0
      %v277 = vadd.f32 0.0, %v276
      %v278 = vpop.f32.mrb[0].mxu0
      %279 = vmatprep.mubr.f32.mxu0 0.0
      %v280 = vand.u32 %v188, 4294901760
      %v281 = vsub.f32 %v188, %v280
      %v282 = vand.u32 %v281, 4294901760
      %v283 = vsub.f32 %v281, %v282
      %v284 = vand.u32 %v283, 4294901760
      %285 = vmatmul.mubr.f32.gmra.mrb[0].mxu0 %v284
      %v286 = vpop.f32.mrb[0].mxu0
      %v287 = vadd.f32 0.0, %v286
      %v288 = vpop.f32.mrb[0].mxu0
      %289 = vmatprep.mubr.f32.mxu0 0.0
      %v290 = vand.u32 %v191, 4294901760
      %v291 = vsub.f32 %v191, %v290
      %v292 = vand.u32 %v291, 4294901760
      %v293 = vsub.f32 %v291, %v292
      %v294 = vand.u32 %v293, 4294901760
      %295 = vmatmul.mubr.f32.gmra.mrb[0].mxu0 %v294
      %v296 = vpop.f32.mrb[0].mxu0
      %v297 = vadd.f32 0.0, %v296
      %v298 = vpop.f32.mrb[0].mxu0
      %299 = vdwg.mxu0
      %300 = vmatprep.subr.mxu0 0.0
      %v301 = vand.u32 %v178, 4294901760
      %v302 = vsub.f32 %v178, %v301
      %v303 = vand.u32 %v302, 4294901760
      %v304 = vsub.f32 %v302, %v303
      %v305 = vand.u32 %v304, 4294901760
      %306 = vmatpush1.msra.mxu0 %v305
      %307 = vmatprep.subr.mxu0 0.0
      %v308 = vand.u32 %v179, 4294901760
      %v309 = vsub.f32 %v179, %v308
      %v310 = vand.u32 %v309, 4294901760
      %v311 = vsub.f32 %v309, %v310
      %v312 = vand.u32 %v311, 4294901760
      %313 = vmatpush1.msra.mxu0 %v312
      %314 = vmatprep.subr.mxu0 0.0
      %315 = vmatpush1.msra.mxu0 0.0
      %316 = vmatprep.subr.mxu0 0.0
      %317 = vmatpush1.msra.mxu0 0.0
      %318 = vmatprep.subr.mxu0 0.0
      %319 = vmatpush1.msra.mxu0 0.0
      %320 = vmatprep.subr.mxu0 0.0
      %321 = vmatpush1.msra.mxu0 0.0
      %322 = vmatprep.subr.mxu0 0.0
      %323 = vmatpush1.msra.mxu0 0.0
      %324 = vmatprep.subr.mxu0 0.0
      %325 = vmatpush1.msra.mxu0 0.0
      %326 = vmatprep.subr.mxu0 0.0
      %327 = vmatpush1.msra.mxu0 0.0
      %328 = vmatprep.subr.mxu0 0.0
      %329 = vmatpush1.msra.mxu0 0.0
      %330 = vmatprep.subr.mxu0 0.0
      %331 = vmatpush1.msra.mxu0 0.0
      %332 = vmatprep.subr.mxu0 0.0
      %333 = vmatpush1.msra.mxu0 0.0
      %334 = vmatprep.subr.mxu0 0.0
      %335 = vmatpush1.msra.mxu0 0.0
      %336 = vmatprep.subr.mxu0 0.0
      %337 = vmatpush1.msra.mxu0 0.0
      %338 = vmatprep.subr.mxu0 0.0
      %339 = vmatpush1.msra.mxu0 0.0
      %340 = vmatprep.subr.mxu0 0.0
      %341 = vmatpush1.msra.mxu0 0.0
      %342 = vmatprep.subr.mxu0 0.0
      %343 = vmatpush1.msra.mxu0 0.0
      %344 = vmatprep.subr.mxu0 0.0
      %345 = vmatpush1.msra.mxu0 0.0
      %346 = vmatprep.subr.mxu0 0.0
      %347 = vmatpush1.msra.mxu0 0.0
      %348 = vmatprep.subr.mxu0 0.0
      %349 = vmatpush1.msra.mxu0 0.0
      %350 = vmatprep.subr.mxu0 0.0
      %351 = vmatpush1.msra.mxu0 0.0
      %352 = vmatprep.subr.mxu0 0.0
      %353 = vmatpush1.msra.mxu0 0.0
      %354 = vmatprep.subr.mxu0 0.0
      %355 = vmatpush1.msra.mxu0 0.0
      %356 = vmatprep.subr.mxu0 0.0
      %357 = vmatpush1.msra.mxu0 0.0
      %358 = vmatprep.subr.mxu0 0.0
      %359 = vmatpush1.msra.mxu0 0.0
      %360 = vmatprep.subr.mxu0 0.0
      %361 = vmatpush1.msra.mxu0 0.0
      %362 = vmatprep.subr.mxu0 0.0
      %363 = vmatpush1.msra.mxu0 0.0
      %364 = vmatprep.subr.mxu0 0.0
      %365 = vmatpush1.msra.mxu0 0.0
      %366 = vmatprep.subr.mxu0 0.0
      %367 = vmatpush1.msra.mxu0 0.0
      %368 = vmatprep.subr.mxu0 0.0
      %369 = vmatpush1.msra.mxu0 0.0
      %370 = vmatprep.subr.mxu0 0.0
      %371 = vmatpush1.msra.mxu0 0.0
      %372 = vmatprep.subr.mxu0 0.0
      %373 = vmatpush1.msra.mxu0 0.0
      %374 = vmatprep.mubr.f32.mxu0 0.0
      %v375 = vand.u32 %v182, 4294901760
      %376 = vmatmul.mubr.f32.gmra.mrb[0].mxu0 %v375
      %v377 = vpop.f32.mrb[0].mxu0
      %v378 = vadd.f32 %v267, %v377
      %v379 = vpop.f32.mrb[0].mxu0
      %380 = vmatprep.mubr.f32.mxu0 0.0
      %v381 = vand.u32 %v185, 4294901760
      %382 = vmatmul.mubr.f32.gmra.mrb[0].mxu0 %v381
      %v383 = vpop.f32.mrb[0].mxu0
      %v384 = vadd.f32 %v277, %v383
      %v385 = vpop.f32.mrb[0].mxu0
      %386 = vmatprep.mubr.f32.mxu0 0.0
      %v387 = vand.u32 %v188, 4294901760
      %388 = vmatmul.mubr.f32.gmra.mrb[0].mxu0 %v387
      %v389 = vpop.f32.mrb[0].mxu0
      %v390 = vadd.f32 %v287, %v389
      %v391 = vpop.f32.mrb[0].mxu0
      %392 = vmatprep.mubr.f32.mxu0 0.0
      %v393 = vand.u32 %v191, 4294901760
      %394 = vmatmul.mubr.f32.gmra.mrb[0].mxu0 %v393
      %v395 = vpop.f32.mrb[0].mxu0
      %v396 = vadd.f32 %v297, %v395
      %v397 = vpop.f32.mrb[0].mxu0
      %398 = vdwg.mxu0
      %399 = vmatprep.subr.mxu0 0.0
      %v400 = vand.u32 %v178, 4294901760
      %v401 = vsub.f32 %v178, %v400
      %402 = vmatpush1.msra.mxu0 %v401
      %403 = vmatprep.subr.mxu0 0.0
      %v404 = vand.u32 %v179, 4294901760
      %v405 = vsub.f32 %v179, %v404
      %406 = vmatpush1.msra.mxu0 %v405
      %407 = vmatprep.subr.mxu0 0.0
      %408 = vmatpush1.msra.mxu0 0.0
      %409 = vmatprep.subr.mxu0 0.0
      %410 = vmatpush1.msra.mxu0 0.0
      %411 = vmatprep.subr.mxu0 0.0
      %412 = vmatpush1.msra.mxu0 0.0
      %413 = vmatprep.subr.mxu0 0.0
      %414 = vmatpush1.msra.mxu0 0.0
      %415 = vmatprep.subr.mxu0 0.0
      %416 = vmatpush1.msra.mxu0 0.0
      %417 = vmatprep.subr.mxu0 0.0
      %418 = vmatpush1.msra.mxu0 0.0
      %419 = vmatprep.subr.mxu0 0.0
      %420 = vmatpush1.msra.mxu0 0.0
      %421 = vmatprep.subr.mxu0 0.0
      %422 = vmatpush1.msra.mxu0 0.0
      %423 = vmatprep.subr.mxu0 0.0
      %424 = vmatpush1.msra.mxu0 0.0
      %425 = vmatprep.subr.mxu0 0.0
      %426 = vmatpush1.msra.mxu0 0.0
      %427 = vmatprep.subr.mxu0 0.0
      %428 = vmatpush1.msra.mxu0 0.0
      %429 = vmatprep.subr.mxu0 0.0
      %430 = vmatpush1.msra.mxu0 0.0
      %431 = vmatprep.subr.mxu0 0.0
      %432 = vmatpush1.msra.mxu0 0.0
      %433 = vmatprep.subr.mxu0 0.0
      %434 = vmatpush1.msra.mxu0 0.0
      %435 = vmatprep.subr.mxu0 0.0
      %436 = vmatpush1.msra.mxu0 0.0
      %437 = vmatprep.subr.mxu0 0.0
      %438 = vmatpush1.msra.mxu0 0.0
      %439 = vmatprep.subr.mxu0 0.0
      %440 = vmatpush1.msra.mxu0 0.0
      %441 = vmatprep.subr.mxu0 0.0
      %442 = vmatpush1.msra.mxu0 0.0
      %443 = vmatprep.subr.mxu0 0.0
      %444 = vmatpush1.msra.mxu0 0.0
      %445 = vmatprep.subr.mxu0 0.0
      %446 = vmatpush1.msra.mxu0 0.0
      %447 = vmatprep.subr.mxu0 0.0
      %448 = vmatpush1.msra.mxu0 0.0
      %449 = vmatprep.subr.mxu0 0.0
      %450 = vmatpush1.msra.mxu0 0.0
      %451 = vmatprep.subr.mxu0 0.0
      %452 = vmatpush1.msra.mxu0 0.0
      %453 = vmatprep.subr.mxu0 0.0
      %454 = vmatpush1.msra.mxu0 0.0
      %455 = vmatprep.subr.mxu0 0.0
      %456 = vmatpush1.msra.mxu0 0.0
      %457 = vmatprep.subr.mxu0 0.0
      %458 = vmatpush1.msra.mxu0 0.0
      %459 = vmatprep.subr.mxu0 0.0
      %460 = vmatpush1.msra.mxu0 0.0
      %461 = vmatprep.subr.mxu0 0.0
      %462 = vmatpush1.msra.mxu0 0.0
      %463 = vmatprep.subr.mxu0 0.0
      %464 = vmatpush1.msra.mxu0 0.0
      %465 = vmatprep.subr.mxu0 0.0
      %466 = vmatpush1.msra.mxu0 0.0
      %467 = vmatprep.mubr.f32.mxu0 0.0
      %v468 = vand.u32 %v182, 4294901760
      %v469 = vsub.f32 %v182, %v468
      %470 = vmatmul.mubr.f32.gmra.mrb[0].mxu0 %v469
      %v471 = vpop.f32.mrb[0].mxu0
      %v472 = vadd.f32 %v378, %v471
      %v473 = vpop.f32.mrb[0].mxu0
      %474 = vmatprep.mubr.f32.mxu0 0.0
      %v475 = vand.u32 %v185, 4294901760
      %v476 = vsub.f32 %v185, %v475
      %477 = vmatmul.mubr.f32.gmra.mrb[0].mxu0 %v476
      %v478 = vpop.f32.mrb[0].mxu0
      %v479 = vadd.f32 %v384, %v478
      %v480 = vpop.f32.mrb[0].mxu0
      %481 = vmatprep.mubr.f32.mxu0 0.0
      %v482 = vand.u32 %v188, 4294901760
      %v483 = vsub.f32 %v188, %v482
      %484 = vmatmul.mubr.f32.gmra.mrb[0].mxu0 %v483
      %v485 = vpop.f32.mrb[0].mxu0
      %v486 = vadd.f32 %v390, %v485
      %v487 = vpop.f32.mrb[0].mxu0
      %488 = vmatprep.mubr.f32.mxu0 0.0
      %v489 = vand.u32 %v191, 4294901760
      %v490 = vsub.f32 %v191, %v489
      %491 = vmatmul.mubr.f32.gmra.mrb[0].mxu0 %v490
      %v492 = vpop.f32.mrb[0].mxu0
      %v493 = vadd.f32 %v396, %v492
      %v494 = vpop.f32.mrb[0].mxu0
      %495 = vdwg.mxu0
      %496 = vmatprep.subr.mxu0 0.0
      %v497 = vand.u32 %v178, 4294901760
      %498 = vmatpush1.msra.mxu0 %v497
      %499 = vmatprep.subr.mxu0 0.0
      %v500 = vand.u32 %v179, 4294901760
      %501 = vmatpush1.msra.mxu0 %v500
      %502 = vmatprep.subr.mxu0 0.0
      %503 = vmatpush1.msra.mxu0 0.0
      %504 = vmatprep.subr.mxu0 0.0
      %505 = vmatpush1.msra.mxu0 0.0
      %506 = vmatprep.subr.mxu0 0.0
      %507 = vmatpush1.msra.mxu0 0.0
      %508 = vmatprep.subr.mxu0 0.0
      %509 = vmatpush1.msra.mxu0 0.0
      %510 = vmatprep.subr.mxu0 0.0
      %511 = vmatpush1.msra.mxu0 0.0
      %512 = vmatprep.subr.mxu0 0.0
      %513 = vmatpush1.msra.mxu0 0.0
      %514 = vmatprep.subr.mxu0 0.0
      %515 = vmatpush1.msra.mxu0 0.0
      %516 = vmatprep.subr.mxu0 0.0
      %517 = vmatpush1.msra.mxu0 0.0
      %518 = vmatprep.subr.mxu0 0.0
      %519 = vmatpush1.msra.mxu0 0.0
      %520 = vmatprep.subr.mxu0 0.0
      %521 = vmatpush1.msra.mxu0 0.0
      %522 = vmatprep.subr.mxu0 0.0
      %523 = vmatpush1.msra.mxu0 0.0
      %524 = vmatprep.subr.mxu0 0.0
      %525 = vmatpush1.msra.mxu0 0.0
      %526 = vmatprep.subr.mxu0 0.0
      %527 = vmatpush1.msra.mxu0 0.0
      %528 = vmatprep.subr.mxu0 0.0
      %529 = vmatpush1.msra.mxu0 0.0
      %530 = vmatprep.subr.mxu0 0.0
      %531 = vmatpush1.msra.mxu0 0.0
      %532 = vmatprep.subr.mxu0 0.0
      %533 = vmatpush1.msra.mxu0 0.0
      %534 = vmatprep.subr.mxu0 0.0
      %535 = vmatpush1.msra.mxu0 0.0
      %536 = vmatprep.subr.mxu0 0.0
      %537 = vmatpush1.msra.mxu0 0.0
      %538 = vmatprep.subr.mxu0 0.0
      %539 = vmatpush1.msra.mxu0 0.0
      %540 = vmatprep.subr.mxu0 0.0
      %541 = vmatpush1.msra.mxu0 0.0
      %542 = vmatprep.subr.mxu0 0.0
      %543 = vmatpush1.msra.mxu0 0.0
      %544 = vmatprep.subr.mxu0 0.0
      %545 = vmatpush1.msra.mxu0 0.0
      %546 = vmatprep.subr.mxu0 0.0
      %547 = vmatpush1.msra.mxu0 0.0
      %548 = vmatprep.subr.mxu0 0.0
      %549 = vmatpush1.msra.mxu0 0.0
      %550 = vmatprep.subr.mxu0 0.0
      %551 = vmatpush1.msra.mxu0 0.0
      %552 = vmatprep.subr.mxu0 0.0
      %553 = vmatpush1.msra.mxu0 0.0
      %554 = vmatprep.subr.mxu0 0.0
      %555 = vmatpush1.msra.mxu0 0.0
      %556 = vmatprep.subr.mxu0 0.0
      %557 = vmatpush1.msra.mxu0 0.0
      %558 = vmatprep.subr.mxu0 0.0
      %559 = vmatpush1.msra.mxu0 0.0
      %560 = vmatprep.subr.mxu0 0.0
      %561 = vmatpush1.msra.mxu0 0.0
      %562 = vmatprep.mubr.f32.mxu0 0.0
      %v563 = vand.u32 %v182, 4294901760
      %v564 = vsub.f32 %v182, %v563
      %v565 = vand.u32 %v564, 4294901760
      %566 = vmatmul.mubr.f32.gmra.mrb[0].mxu0 %v565
      %v567 = vpop.f32.mrb[0].mxu0
      %v568 = vadd.f32 %v472, %v567
      %v569 = vpop.f32.mrb[0].mxu0
      %570 = vmatprep.mubr.f32.mxu0 0.0
      %v571 = vand.u32 %v185, 4294901760
      %v572 = vsub.f32 %v185, %v571
      %v573 = vand.u32 %v572, 4294901760
      %574 = vmatmul.mubr.f32.gmra.mrb[0].mxu0 %v573
      %v575 = vpop.f32.mrb[0].mxu0
      %v576 = vadd.f32 %v479, %v575
      %v577 = vpop.f32.mrb[0].mxu0
      %578 = vmatprep.mubr.f32.mxu0 0.0
      %v579 = vand.u32 %v188, 4294901760
      %v580 = vsub.f32 %v188, %v579
      %v581 = vand.u32 %v580, 4294901760
      %582 = vmatmul.mubr.f32.gmra.mrb[0].mxu0 %v581
      %v583 = vpop.f32.mrb[0].mxu0
      %v584 = vadd.f32 %v486, %v583
      %v585 = vpop.f32.mrb[0].mxu0
      %586 = vmatprep.mubr.f32.mxu0 0.0
      %v587 = vand.u32 %v191, 4294901760
      %v588 = vsub.f32 %v191, %v587
      %v589 = vand.u32 %v588, 4294901760
      %590 = vmatmul.mubr.f32.gmra.mrb[0].mxu0 %v589
      %v591 = vpop.f32.mrb[0].mxu0
      %v592 = vadd.f32 %v493, %v591
      %v593 = vpop.f32.mrb[0].mxu0
      %594 = vdwg.mxu0
      %595 = vmatprep.subr.mxu0 0.0
      %v596 = vand.u32 %v178, 4294901760
      %v597 = vsub.f32 %v178, %v596
      %v598 = vand.u32 %v597, 4294901760
      %599 = vmatpush1.msra.mxu0 %v598
      %600 = vmatprep.subr.mxu0 0.0
      %v601 = vand.u32 %v179, 4294901760
      %v602 = vsub.f32 %v179, %v601
      %v603 = vand.u32 %v602, 4294901760
      %604 = vmatpush1.msra.mxu0 %v603
      %605 = vmatprep.subr.mxu0 0.0
      %606 = vmatpush1.msra.mxu0 0.0
      %607 = vmatprep.subr.mxu0 0.0
      %608 = vmatpush1.msra.mxu0 0.0
      %609 = vmatprep.subr.mxu0 0.0
      %610 = vmatpush1.msra.mxu0 0.0
      %611 = vmatprep.subr.mxu0 0.0
      %612 = vmatpush1.msra.mxu0 0.0
      %613 = vmatprep.subr.mxu0 0.0
      %614 = vmatpush1.msra.mxu0 0.0
      %615 = vmatprep.subr.mxu0 0.0
      %616 = vmatpush1.msra.mxu0 0.0
      %617 = vmatprep.subr.mxu0 0.0
      %618 = vmatpush1.msra.mxu0 0.0
      %619 = vmatprep.subr.mxu0 0.0
      %620 = vmatpush1.msra.mxu0 0.0
      %621 = vmatprep.subr.mxu0 0.0
      %622 = vmatpush1.msra.mxu0 0.0
      %623 = vmatprep.subr.mxu0 0.0
      %624 = vmatpush1.msra.mxu0 0.0
      %625 = vmatprep.subr.mxu0 0.0
      %626 = vmatpush1.msra.mxu0 0.0
      %627 = vmatprep.subr.mxu0 0.0
      %628 = vmatpush1.msra.mxu0 0.0
      %629 = vmatprep.subr.mxu0 0.0
      %630 = vmatpush1.msra.mxu0 0.0
      %631 = vmatprep.subr.mxu0 0.0
      %632 = vmatpush1.msra.mxu0 0.0
      %633 = vmatprep.subr.mxu0 0.0
      %634 = vmatpush1.msra.mxu0 0.0
      %635 = vmatprep.subr.mxu0 0.0
      %636 = vmatpush1.msra.mxu0 0.0
      %637 = vmatprep.subr.mxu0 0.0
      %638 = vmatpush1.msra.mxu0 0.0
      %639 = vmatprep.subr.mxu0 0.0
      %640 = vmatpush1.msra.mxu0 0.0
      %641 = vmatprep.subr.mxu0 0.0
      %642 = vmatpush1.msra.mxu0 0.0
      %643 = vmatprep.subr.mxu0 0.0
      %644 = vmatpush1.msra.mxu0 0.0
      %645 = vmatprep.subr.mxu0 0.0
      %646 = vmatpush1.msra.mxu0 0.0
      %647 = vmatprep.subr.mxu0 0.0
      %648 = vmatpush1.msra.mxu0 0.0
      %649 = vmatprep.subr.mxu0 0.0
      %650 = vmatpush1.msra.mxu0 0.0
      %651 = vmatprep.subr.mxu0 0.0
      %652 = vmatpush1.msra.mxu0 0.0
      %653 = vmatprep.subr.mxu0 0.0
      %654 = vmatpush1.msra.mxu0 0.0
      %655 = vmatprep.subr.mxu0 0.0
      %656 = vmatpush1.msra.mxu0 0.0
      %657 = vmatprep.subr.mxu0 0.0
      %658 = vmatpush1.msra.mxu0 0.0
      %659 = vmatprep.subr.mxu0 0.0
      %660 = vmatpush1.msra.mxu0 0.0
      %661 = vmatprep.subr.mxu0 0.0
      %662 = vmatpush1.msra.mxu0 0.0
      %663 = vmatprep.subr.mxu0 0.0
      %664 = vmatpush1.msra.mxu0 0.0
      %665 = vmatprep.mubr.f32.mxu0 0.0
      %v666 = vand.u32 %v182, 4294901760
      %667 = vmatmul.mubr.f32.gmra.mrb[0].mxu0 %v666
      %v668 = vpop.f32.mrb[0].mxu0
      %v669 = vadd.f32 %v568, %v668
      %v670 = vpop.f32.mrb[0].mxu0
      %671 = vmatprep.mubr.f32.mxu0 0.0
      %v672 = vand.u32 %v185, 4294901760
      %673 = vmatmul.mubr.f32.gmra.mrb[0].mxu0 %v672
      %v674 = vpop.f32.mrb[0].mxu0
      %v675 = vadd.f32 %v576, %v674
      %v676 = vpop.f32.mrb[0].mxu0
      %677 = vmatprep.mubr.f32.mxu0 0.0
      %v678 = vand.u32 %v188, 4294901760
      %679 = vmatmul.mubr.f32.gmra.mrb[0].mxu0 %v678
      %v680 = vpop.f32.mrb[0].mxu0
      %v681 = vadd.f32 %v584, %v680
      %v682 = vpop.f32.mrb[0].mxu0
      %683 = vmatprep.mubr.f32.mxu0 0.0
      %v684 = vand.u32 %v191, 4294901760
      %685 = vmatmul.mubr.f32.gmra.mrb[0].mxu0 %v684
      %v686 = vpop.f32.mrb[0].mxu0
      %v687 = vadd.f32 %v592, %v686
      %v688 = vpop.f32.mrb[0].mxu0
      %689 = vdwg.mxu0
      %690 = vmatprep.subr.mxu0 0.0
      %v691 = vand.u32 %v178, 4294901760
      %692 = vmatpush1.msra.mxu0 %v691
      %693 = vmatprep.subr.mxu0 0.0
      %v694 = vand.u32 %v179, 4294901760
      %695 = vmatpush1.msra.mxu0 %v694
      %696 = vmatprep.subr.mxu0 0.0
      %697 = vmatpush1.msra.mxu0 0.0
      %698 = vmatprep.subr.mxu0 0.0
      %699 = vmatpush1.msra.mxu0 0.0
      %700 = vmatprep.subr.mxu0 0.0
      %701 = vmatpush1.msra.mxu0 0.0
      %702 = vmatprep.subr.mxu0 0.0
      %703 = vmatpush1.msra.mxu0 0.0
      %704 = vmatprep.subr.mxu0 0.0
      %705 = vmatpush1.msra.mxu0 0.0
      %706 = vmatprep.subr.mxu0 0.0
      %707 = vmatpush1.msra.mxu0 0.0
      %708 = vmatprep.subr.mxu0 0.0
      %709 = vmatpush1.msra.mxu0 0.0
      %710 = vmatprep.subr.mxu0 0.0
      %711 = vmatpush1.msra.mxu0 0.0
      %712 = vmatprep.subr.mxu0 0.0
      %713 = vmatpush1.msra.mxu0 0.0
      %714 = vmatprep.subr.mxu0 0.0
      %715 = vmatpush1.msra.mxu0 0.0
      %716 = vmatprep.subr.mxu0 0.0
      %717 = vmatpush1.msra.mxu0 0.0
      %718 = vmatprep.subr.mxu0 0.0
      %719 = vmatpush1.msra.mxu0 0.0
      %720 = vmatprep.subr.mxu0 0.0
      %721 = vmatpush1.msra.mxu0 0.0
      %722 = vmatprep.subr.mxu0 0.0
      %723 = vmatpush1.msra.mxu0 0.0
      %724 = vmatprep.subr.mxu0 0.0
      %725 = vmatpush1.msra.mxu0 0.0
      %726 = vmatprep.subr.mxu0 0.0
      %727 = vmatpush1.msra.mxu0 0.0
      %728 = vmatprep.subr.mxu0 0.0
      %729 = vmatpush1.msra.mxu0 0.0
      %730 = vmatprep.subr.mxu0 0.0
      %731 = vmatpush1.msra.mxu0 0.0
      %732 = vmatprep.subr.mxu0 0.0
      %733 = vmatpush1.msra.mxu0 0.0
      %734 = vmatprep.subr.mxu0 0.0
      %735 = vmatpush1.msra.mxu0 0.0
      %736 = vmatprep.subr.mxu0 0.0
      %737 = vmatpush1.msra.mxu0 0.0
      %738 = vmatprep.subr.mxu0 0.0
      %739 = vmatpush1.msra.mxu0 0.0
      %740 = vmatprep.subr.mxu0 0.0
      %741 = vmatpush1.msra.mxu0 0.0
      %742 = vmatprep.subr.mxu0 0.0
      %743 = vmatpush1.msra.mxu0 0.0
      %744 = vmatprep.subr.mxu0 0.0
      %745 = vmatpush1.msra.mxu0 0.0
      %746 = vmatprep.subr.mxu0 0.0
      %747 = vmatpush1.msra.mxu0 0.0
      %748 = vmatprep.subr.mxu0 0.0
      %749 = vmatpush1.msra.mxu0 0.0
      %750 = vmatprep.subr.mxu0 0.0
      %751 = vmatpush1.msra.mxu0 0.0
      %752 = vmatprep.subr.mxu0 0.0
      %753 = vmatpush1.msra.mxu0 0.0
      %754 = vmatprep.subr.mxu0 0.0
      %755 = vmatpush1.msra.mxu0 0.0
      %756 = vmatprep.mubr.f32.mxu0 0.0
      %v757 = vand.u32 %v182, 4294901760
      %758 = vmatmul.mubr.f32.gmra.mrb[0].mxu0 %v757
      %v759 = vpop.f32.mrb[0].mxu0
      %v760 = vadd.f32 %v669, %v759
      %v761 = vpop.f32.mrb[0].mxu0
      %762 = vmatprep.mubr.f32.mxu0 0.0
      %v763 = vand.u32 %v185, 4294901760
      %764 = vmatmul.mubr.f32.gmra.mrb[0].mxu0 %v763
      %v765 = vpop.f32.mrb[0].mxu0
      %v766 = vadd.f32 %v675, %v765
      %v767 = vpop.f32.mrb[0].mxu0
      %768 = vmatprep.mubr.f32.mxu0 0.0
      %v769 = vand.u32 %v188, 4294901760
      %770 = vmatmul.mubr.f32.gmra.mrb[0].mxu0 %v769
      %v771 = vpop.f32.mrb[0].mxu0
      %v772 = vadd.f32 %v681, %v771
      %v773 = vpop.f32.mrb[0].mxu0
      %774 = vmatprep.mubr.f32.mxu0 0.0
      %v775 = vand.u32 %v191, 4294901760
      %776 = vmatmul.mubr.f32.gmra.mrb[0].mxu0 %v775
      %v777 = vpop.f32.mrb[0].mxu0
      %v778 = vadd.f32 %v687, %v777
      %v779 = vpop.f32.mrb[0].mxu0
      %780 = vdwg.mxu0
      %v781 = vld [vmem:[%s2] sm:$0xff]
      %v782 = vld [vmem:[%s2 + $0x8] sm:$0xff]
      %v783 = vld [vmem:[%s2 + $0x10] sm:$0xff]
      %v784 = vld [vmem:[%s2 + $0x18] sm:$0xff]
      %v785 = vld [vmem:[%s2 + $0x20] sm:$0xff]
      %v786 = vld [vmem:[%s2 + $0x28] sm:$0xff]
      %v787 = vld [vmem:[%s2 + $0x30] sm:$0xff]
      %v788 = vld [vmem:[%s2 + $0x38] sm:$0xff]
      %vm789 = vcmask 261120
      %v791 = vsel %vm789, %v781, 0
      %v794 = vsel %vm789, %v782, 0
      %v797 = vsel %vm789, %v783, 0
      %v800 = vsel %vm789, %v784, 0
      %v803 = vsel %vm789, %v785, 0
      %v806 = vsel %vm789, %v786, 0
      %v809 = vsel %vm789, %v787, 0
      %v812 = vsel %vm789, %v788, 0
      %814 = vmatprep.subr.mxu0 0.0
      %v815 = vand.u32 %v760, 4294901760
      %816 = vmatpush1.msra.mxu0 %v815
      %817 = vmatprep.subr.mxu0 0.0
      %v818 = vand.u32 %v766, 4294901760
      %819 = vmatpush1.msra.mxu0 %v818
      %820 = vmatprep.subr.mxu0 0.0
      %v821 = vand.u32 %v772, 4294901760
      %822 = vmatpush1.msra.mxu0 %v821
      %823 = vmatprep.subr.mxu0 0.0
      %v824 = vand.u32 %v778, 4294901760
      %825 = vmatpush1.msra.mxu0 %v824
      %826 = vmatprep.subr.mxu0 0.0
      %827 = vmatpush1.msra.mxu0 0.0
      %828 = vmatprep.subr.mxu0 0.0
      %829 = vmatpush1.msra.mxu0 0.0
      %830 = vmatprep.subr.mxu0 0.0
      %831 = vmatpush1.msra.mxu0 0.0
      %832 = vmatprep.subr.mxu0 0.0
      %833 = vmatpush1.msra.mxu0 0.0
      %834 = vmatprep.subr.mxu0 0.0
      %835 = vmatpush1.msra.mxu0 0.0
      %836 = vmatprep.subr.mxu0 0.0
      %837 = vmatpush1.msra.mxu0 0.0
      %838 = vmatprep.subr.mxu0 0.0
      %839 = vmatpush1.msra.mxu0 0.0
      %840 = vmatprep.subr.mxu0 0.0
      %841 = vmatpush1.msra.mxu0 0.0
      %842 = vmatprep.subr.mxu0 0.0
      %843 = vmatpush1.msra.mxu0 0.0
      %844 = vmatprep.subr.mxu0 0.0
      %845 = vmatpush1.msra.mxu0 0.0
      %846 = vmatprep.subr.mxu0 0.0
      %847 = vmatpush1.msra.mxu0 0.0
      %848 = vmatprep.subr.mxu0 0.0
      %849 = vmatpush1.msra.mxu0 0.0
      %850 = vmatprep.subr.mxu0 0.0
      %851 = vmatpush1.msra.mxu0 0.0
      %852 = vmatprep.subr.mxu0 0.0
      %853 = vmatpush1.msra.mxu0 0.0
      %854 = vmatprep.subr.mxu0 0.0
      %855 = vmatpush1.msra.mxu0 0.0
      %856 = vmatprep.subr.mxu0 0.0
      %857 = vmatpush1.msra.mxu0 0.0
      %858 = vmatprep.subr.mxu0 0.0
      %859 = vmatpush1.msra.mxu0 0.0
      %860 = vmatprep.subr.mxu0 0.0
      %861 = vmatpush1.msra.mxu0 0.0
      %862 = vmatprep.subr.mxu0 0.0
      %863 = vmatpush1.msra.mxu0 0.0
      %864 = vmatprep.subr.mxu0 0.0
      %865 = vmatpush1.msra.mxu0 0.0
      %866 = vmatprep.subr.mxu0 0.0
      %867 = vmatpush1.msra.mxu0 0.0
      %868 = vmatprep.subr.mxu0 0.0
      %869 = vmatpush1.msra.mxu0 0.0
      %870 = vmatprep.subr.mxu0 0.0
      %871 = vmatpush1.msra.mxu0 0.0
      %872 = vmatprep.subr.mxu0 0.0
      %873 = vmatpush1.msra.mxu0 0.0
      %874 = vmatprep.subr.mxu0 0.0
      %875 = vmatpush1.msra.mxu0 0.0
      %876 = vmatprep.subr.mxu0 0.0
      %877 = vmatpush1.msra.mxu0 0.0
      %878 = vmatprep.subr.mxu0 0.0
      %879 = vmatpush1.msra.mxu0 0.0
      %880 = vmatprep.subr.mxu0 0.0
      %881 = vmatpush1.msra.mxu0 0.0
      %882 = vmatprep.mubr.f32.mxu0 0.0
      %v883 = vand.u32 %v791, 4294901760
      %v884 = vsub.f32 %v791, %v883
      %v885 = vand.u32 %v884, 4294901760
      %v886 = vsub.f32 %v884, %v885
      %v887 = vand.u32 %v886, 4294901760
      %888 = vmatmul.mubr.f32.gmra.mrb[0].mxu0 %v887
      %v889 = vpop.f32.mrb[0].mxu0
      %v890 = vadd.f32 0.0, %v889
      %v891 = vpop.f32.mrb[0].mxu0
      %892 = vmatprep.mubr.f32.mxu0 0.0
      %v893 = vand.u32 %v794, 4294901760
      %v894 = vsub.f32 %v794, %v893
      %v895 = vand.u32 %v894, 4294901760
      %v896 = vsub.f32 %v894, %v895
      %v897 = vand.u32 %v896, 4294901760
      %898 = vmatmul.mubr.f32.gmra.mrb[0].mxu0 %v897
      %v899 = vpop.f32.mrb[0].mxu0
      %v900 = vadd.f32 0.0, %v899
      %v901 = vpop.f32.mrb[0].mxu0
      %902 = vmatprep.mubr.f32.mxu0 0.0
      %v903 = vand.u32 %v797, 4294901760
      %v904 = vsub.f32 %v797, %v903
      %v905 = vand.u32 %v904, 4294901760
      %v906 = vsub.f32 %v904, %v905
      %v907 = vand.u32 %v906, 4294901760
      %908 = vmatmul.mubr.f32.gmra.mrb[0].mxu0 %v907
      %v909 = vpop.f32.mrb[0].mxu0
      %v910 = vadd.f32 0.0, %v909
      %v911 = vpop.f32.mrb[0].mxu0
      %912 = vmatprep.mubr.f32.mxu0 0.0
      %v913 = vand.u32 %v800, 4294901760
      %v914 = vsub.f32 %v800, %v913
      %v915 = vand.u32 %v914, 4294901760
      %v916 = vsub.f32 %v914, %v915
      %v917 = vand.u32 %v916, 4294901760
      %918 = vmatmul.mubr.f32.gmra.mrb[0].mxu0 %v917
      %v919 = vpop.f32.mrb[0].mxu0
      %v920 = vadd.f32 0.0, %v919
      %v921 = vpop.f32.mrb[0].mxu0
      %922 = vmatprep.mubr.f32.mxu0 0.0
      %v923 = vand.u32 %v803, 4294901760
      %v924 = vsub.f32 %v803, %v923
      %v925 = vand.u32 %v924, 4294901760
      %v926 = vsub.f32 %v924, %v925
      %v927 = vand.u32 %v926, 4294901760
      %928 = vmatmul.mubr.f32.gmra.mrb[0].mxu0 %v927
      %v929 = vpop.f32.mrb[0].mxu0
      %v930 = vadd.f32 0.0, %v929
      %v931 = vpop.f32.mrb[0].mxu0
      %932 = vmatprep.mubr.f32.mxu0 0.0
      %v933 = vand.u32 %v806, 4294901760
      %v934 = vsub.f32 %v806, %v933
      %v935 = vand.u32 %v934, 4294901760
      %v936 = vsub.f32 %v934, %v935
      %v937 = vand.u32 %v936, 4294901760
      %938 = vmatmul.mubr.f32.gmra.mrb[0].mxu0 %v937
      %v939 = vpop.f32.mrb[0].mxu0
      %v940 = vadd.f32 0.0, %v939
      %v941 = vpop.f32.mrb[0].mxu0
      %942 = vmatprep.mubr.f32.mxu0 0.0
      %v943 = vand.u32 %v809, 4294901760
      %v944 = vsub.f32 %v809, %v943
      %v945 = vand.u32 %v944, 4294901760
      %v946 = vsub.f32 %v944, %v945
      %v947 = vand.u32 %v946, 4294901760
      %948 = vmatmul.mubr.f32.gmra.mrb[0].mxu0 %v947
      %v949 = vpop.f32.mrb[0].mxu0
      %v950 = vadd.f32 0.0, %v949
      %v951 = vpop.f32.mrb[0].mxu0
      %952 = vmatprep.mubr.f32.mxu0 0.0
      %v953 = vand.u32 %v812, 4294901760
      %v954 = vsub.f32 %v812, %v953
      %v955 = vand.u32 %v954, 4294901760
      %v956 = vsub.f32 %v954, %v955
      %v957 = vand.u32 %v956, 4294901760
      %958 = vmatmul.mubr.f32.gmra.mrb[0].mxu0 %v957
      %v959 = vpop.f32.mrb[0].mxu0
      %v960 = vadd.f32 0.0, %v959
      %v961 = vpop.f32.mrb[0].mxu0
      %962 = vdwg.mxu0
      %963 = vmatprep.subr.mxu0 0.0
      %v964 = vand.u32 %v760, 4294901760
      %v965 = vsub.f32 %v760, %v964
      %v966 = vand.u32 %v965, 4294901760
      %v967 = vsub.f32 %v965, %v966
      %v968 = vand.u32 %v967, 4294901760
      %969 = vmatpush1.msra.mxu0 %v968
      %970 = vmatprep.subr.mxu0 0.0
      %v971 = vand.u32 %v766, 4294901760
      %v972 = vsub.f32 %v766, %v971
      %v973 = vand.u32 %v972, 4294901760
      %v974 = vsub.f32 %v972, %v973
      %v975 = vand.u32 %v974, 4294901760
      %976 = vmatpush1.msra.mxu0 %v975
      %977 = vmatprep.subr.mxu0 0.0
      %v978 = vand.u32 %v772, 4294901760
      %v979 = vsub.f32 %v772, %v978
      %v980 = vand.u32 %v979, 4294901760
      %v981 = vsub.f32 %v979, %v980
      %v982 = vand.u32 %v981, 4294901760
      %983 = vmatpush1.msra.mxu0 %v982
      %984 = vmatprep.subr.mxu0 0.0
      %v985 = vand.u32 %v778, 4294901760
      %v986 = vsub.f32 %v778, %v985
      %v987 = vand.u32 %v986, 4294901760
      %v988 = vsub.f32 %v986, %v987
      %v989 = vand.u32 %v988, 4294901760
      %990 = vmatpush1.msra.mxu0 %v989
      %991 = vmatprep.subr.mxu0 0.0
      %992 = vmatpush1.msra.mxu0 0.0
      %993 = vmatprep.subr.mxu0 0.0
      %994 = vmatpush1.msra.mxu0 0.0
      %995 = vmatprep.subr.mxu0 0.0
      %996 = vmatpush1.msra.mxu0 0.0
      %997 = vmatprep.subr.mxu0 0.0
      %998 = vmatpush1.msra.mxu0 0.0
      %999 = vmatprep.subr.mxu0 0.0
      %1000 = vmatpush1.msra.mxu0 0.0
      %1001 = vmatprep.subr.mxu0 0.0
      %1002 = vmatpush1.msra.mxu0 0.0
      %1003 = vmatprep.subr.mxu0 0.0
      %1004 = vmatpush1.msra.mxu0 0.0
      %1005 = vmatprep.subr.mxu0 0.0
      %1006 = vmatpush1.msra.mxu0 0.0
      %1007 = vmatprep.subr.mxu0 0.0
      %1008 = vmatpush1.msra.mxu0 0.0
      %1009 = vmatprep.subr.mxu0 0.0
      %1010 = vmatpush1.msra.mxu0 0.0
      %1011 = vmatprep.subr.mxu0 0.0
      %1012 = vmatpush1.msra.mxu0 0.0
      %1013 = vmatprep.subr.mxu0 0.0
      %1014 = vmatpush1.msra.mxu0 0.0
      %1015 = vmatprep.subr.mxu0 0.0
      %1016 = vmatpush1.msra.mxu0 0.0
      %1017 = vmatprep.subr.mxu0 0.0
      %1018 = vmatpush1.msra.mxu0 0.0
      %1019 = vmatprep.subr.mxu0 0.0
      %1020 = vmatpush1.msra.mxu0 0.0
      %1021 = vmatprep.subr.mxu0 0.0
      %1022 = vmatpush1.msra.mxu0 0.0
      %1023 = vmatprep.subr.mxu0 0.0
      %1024 = vmatpush1.msra.mxu0 0.0
      %1025 = vmatprep.subr.mxu0 0.0
      %1026 = vmatpush1.msra.mxu0 0.0
      %1027 = vmatprep.subr.mxu0 0.0
      %1028 = vmatpush1.msra.mxu0 0.0
      %1029 = vmatprep.subr.mxu0 0.0
      %1030 = vmatpush1.msra.mxu0 0.0
      %1031 = vmatprep.subr.mxu0 0.0
      %1032 = vmatpush1.msra.mxu0 0.0
      %1033 = vmatprep.subr.mxu0 0.0
      %1034 = vmatpush1.msra.mxu0 0.0
      %1035 = vmatprep.subr.mxu0 0.0
      %1036 = vmatpush1.msra.mxu0 0.0
      %1037 = vmatprep.subr.mxu0 0.0
      %1038 = vmatpush1.msra.mxu0 0.0
      %1039 = vmatprep.subr.mxu0 0.0
      %1040 = vmatpush1.msra.mxu0 0.0
      %1041 = vmatprep.subr.mxu0 0.0
      %1042 = vmatpush1.msra.mxu0 0.0
      %1043 = vmatprep.subr.mxu0 0.0
      %1044 = vmatpush1.msra.mxu0 0.0
      %1045 = vmatprep.subr.mxu0 0.0
      %1046 = vmatpush1.msra.mxu0 0.0
      %1047 = vmatprep.mubr.f32.mxu0 0.0
      %v1048 = vand.u32 %v791, 4294901760
      %1049 = vmatmul.mubr.f32.gmra.mrb[0].mxu0 %v1048
      %v1050 = vpop.f32.mrb[0].mxu0
      %v1051 = vadd.f32 %v890, %v1050
      %v1052 = vpop.f32.mrb[0].mxu0
      %1053 = vmatprep.mubr.f32.mxu0 0.0
      %v1054 = vand.u32 %v794, 4294901760
      %1055 = vmatmul.mubr.f32.gmra.mrb[0].mxu0 %v1054
      %v1056 = vpop.f32.mrb[0].mxu0
      %v1057 = vadd.f32 %v900, %v1056
      %v1058 = vpop.f32.mrb[0].mxu0
      %1059 = vmatprep.mubr.f32.mxu0 0.0
      %v1060 = vand.u32 %v797, 4294901760
      %1061 = vmatmul.mubr.f32.gmra.mrb[0].mxu0 %v1060
      %v1062 = vpop.f32.mrb[0].mxu0
      %v1063 = vadd.f32 %v910, %v1062
      %v1064 = vpop.f32.mrb[0].mxu0
      %1065 = vmatprep.mubr.f32.mxu0 0.0
      %v1066 = vand.u32 %v800, 4294901760
      %1067 = vmatmul.mubr.f32.gmra.mrb[0].mxu0 %v1066
      %v1068 = vpop.f32.mrb[0].mxu0
      %v1069 = vadd.f32 %v920, %v1068
      %v1070 = vpop.f32.mrb[0].mxu0
      %1071 = vmatprep.mubr.f32.mxu0 0.0
      %v1072 = vand.u32 %v803, 4294901760
      %1073 = vmatmul.mubr.f32.gmra.mrb[0].mxu0 %v1072
      %v1074 = vpop.f32.mrb[0].mxu0
      %v1075 = vadd.f32 %v930, %v1074
      %v1076 = vpop.f32.mrb[0].mxu0
      %1077 = vmatprep.mubr.f32.mxu0 0.0
      %v1078 = vand.u32 %v806, 4294901760
      %1079 = vmatmul.mubr.f32.gmra.mrb[0].mxu0 %v1078
      %v1080 = vpop.f32.mrb[0].mxu0
      %v1081 = vadd.f32 %v940, %v1080
      %v1082 = vpop.f32.mrb[0].mxu0
      %1083 = vmatprep.mubr.f32.mxu0 0.0
      %v1084 = vand.u32 %v809, 4294901760
      %1085 = vmatmul.mubr.f32.gmra.mrb[0].mxu0 %v1084
      %v1086 = vpop.f32.mrb[0].mxu0
      %v1087 = vadd.f32 %v950, %v1086
      %v1088 = vpop.f32.mrb[0].mxu0
      %1089 = vmatprep.mubr.f32.mxu0 0.0
      %v1090 = vand.u32 %v812, 4294901760
      %1091 = vmatmul.mubr.f32.gmra.mrb[0].mxu0 %v1090
      %v1092 = vpop.f32.mrb[0].mxu0
      %v1093 = vadd.f32 %v960, %v1092
      %v1094 = vpop.f32.mrb[0].mxu0
      %1095 = vdwg.mxu0
      %1096 = vmatprep.subr.mxu0 0.0
      %v1097 = vand.u32 %v760, 4294901760
      %v1098 = vsub.f32 %v760, %v1097
      %1099 = vmatpush1.msra.mxu0 %v1098
      %1100 = vmatprep.subr.mxu0 0.0
      %v1101 = vand.u32 %v766, 4294901760
      %v1102 = vsub.f32 %v766, %v1101
      %1103 = vmatpush1.msra.mxu0 %v1102
      %1104 = vmatprep.subr.mxu0 0.0
      %v1105 = vand.u32 %v772, 4294901760
      %v1106 = vsub.f32 %v772, %v1105
      %1107 = vmatpush1.msra.mxu0 %v1106
      %1108 = vmatprep.subr.mxu0 0.0
      %v1109 = vand.u32 %v778, 4294901760
      %v1110 = vsub.f32 %v778, %v1109
      %1111 = vmatpush1.msra.mxu0 %v1110
      %1112 = vmatprep.subr.mxu0 0.0
      %1113 = vmatpush1.msra.mxu0 0.0
      %1114 = vmatprep.subr.mxu0 0.0
      %1115 = vmatpush1.msra.mxu0 0.0
      %1116 = vmatprep.subr.mxu0 0.0
      %1117 = vmatpush1.msra.mxu0 0.0
      %1118 = vmatprep.subr.mxu0 0.0
      %1119 = vmatpush1.msra.mxu0 0.0
      %1120 = vmatprep.subr.mxu0 0.0
      %1121 = vmatpush1.msra.mxu0 0.0
      %1122 = vmatprep.subr.mxu0 0.0
      %1123 = vmatpush1.msra.mxu0 0.0
      %1124 = vmatprep.subr.mxu0 0.0
      %1125 = vmatpush1.msra.mxu0 0.0
      %1126 = vmatprep.subr.mxu0 0.0
      %1127 = vmatpush1.msra.mxu0 0.0
      %1128 = vmatprep.subr.mxu0 0.0
      %1129 = vmatpush1.msra.mxu0 0.0
      %1130 = vmatprep.subr.mxu0 0.0
      %1131 = vmatpush1.msra.mxu0 0.0
      %1132 = vmatprep.subr.mxu0 0.0
      %1133 = vmatpush1.msra.mxu0 0.0
      %1134 = vmatprep.subr.mxu0 0.0
      %1135 = vmatpush1.msra.mxu0 0.0
      %1136 = vmatprep.subr.mxu0 0.0
      %1137 = vmatpush1.msra.mxu0 0.0
      %1138 = vmatprep.subr.mxu0 0.0
      %1139 = vmatpush1.msra.mxu0 0.0
      %1140 = vmatprep.subr.mxu0 0.0
      %1141 = vmatpush1.msra.mxu0 0.0
      %1142 = vmatprep.subr.mxu0 0.0
      %1143 = vmatpush1.msra.mxu0 0.0
      %1144 = vmatprep.subr.mxu0 0.0
      %1145 = vmatpush1.msra.mxu0 0.0
      %1146 = vmatprep.subr.mxu0 0.0
      %1147 = vmatpush1.msra.mxu0 0.0
      %1148 = vmatprep.subr.mxu0 0.0
      %1149 = vmatpush1.msra.mxu0 0.0
      %1150 = vmatprep.subr.mxu0 0.0
      %1151 = vmatpush1.msra.mxu0 0.0
      %1152 = vmatprep.subr.mxu0 0.0
      %1153 = vmatpush1.msra.mxu0 0.0
      %1154 = vmatprep.subr.mxu0 0.0
      %1155 = vmatpush1.msra.mxu0 0.0
      %1156 = vmatprep.subr.mxu0 0.0
      %1157 = vmatpush1.msra.mxu0 0.0
      %1158 = vmatprep.subr.mxu0 0.0
      %1159 = vmatpush1.msra.mxu0 0.0
      %1160 = vmatprep.subr.mxu0 0.0
      %1161 = vmatpush1.msra.mxu0 0.0
      %1162 = vmatprep.subr.mxu0 0.0
      %1163 = vmatpush1.msra.mxu0 0.0
      %1164 = vmatprep.subr.mxu0 0.0
      %1165 = vmatpush1.msra.mxu0 0.0
      %1166 = vmatprep.subr.mxu0 0.0
      %1167 = vmatpush1.msra.mxu0 0.0
      %1168 = vmatprep.mubr.f32.mxu0 0.0
      %v1169 = vand.u32 %v791, 4294901760
      %v1170 = vsub.f32 %v791, %v1169
      %1171 = vmatmul.mubr.f32.gmra.mrb[0].mxu0 %v1170
      %v1172 = vpop.f32.mrb[0].mxu0
      %v1173 = vadd.f32 %v1051, %v1172
      %v1174 = vpop.f32.mrb[0].mxu0
      %1175 = vmatprep.mubr.f32.mxu0 0.0
      %v1176 = vand.u32 %v794, 4294901760
      %v1177 = vsub.f32 %v794, %v1176
      %1178 = vmatmul.mubr.f32.gmra.mrb[0].mxu0 %v1177
      %v1179 = vpop.f32.mrb[0].mxu0
      %v1180 = vadd.f32 %v1057, %v1179
      %v1181 = vpop.f32.mrb[0].mxu0
      %1182 = vmatprep.mubr.f32.mxu0 0.0
      %v1183 = vand.u32 %v797, 4294901760
      %v1184 = vsub.f32 %v797, %v1183
      %1185 = vmatmul.mubr.f32.gmra.mrb[0].mxu0 %v1184
      %v1186 = vpop.f32.mrb[0].mxu0
      %v1187 = vadd.f32 %v1063, %v1186
      %v1188 = vpop.f32.mrb[0].mxu0
      %1189 = vmatprep.mubr.f32.mxu0 0.0
      %v1190 = vand.u32 %v800, 4294901760
      %v1191 = vsub.f32 %v800, %v1190
      %1192 = vmatmul.mubr.f32.gmra.mrb[0].mxu0 %v1191
      %v1193 = vpop.f32.mrb[0].mxu0
      %v1194 = vadd.f32 %v1069, %v1193
      %v1195 = vpop.f32.mrb[0].mxu0
      %1196 = vmatprep.mubr.f32.mxu0 0.0
      %v1197 = vand.u32 %v803, 4294901760
      %v1198 = vsub.f32 %v803, %v1197
      %1199 = vmatmul.mubr.f32.gmra.mrb[0].mxu0 %v1198
      %v1200 = vpop.f32.mrb[0].mxu0
      %v1201 = vadd.f32 %v1075, %v1200
      %v1202 = vpop.f32.mrb[0].mxu0
      %1203 = vmatprep.mubr.f32.mxu0 0.0
      %v1204 = vand.u32 %v806, 4294901760
      %v1205 = vsub.f32 %v806, %v1204
      %1206 = vmatmul.mubr.f32.gmra.mrb[0].mxu0 %v1205
      %v1207 = vpop.f32.mrb[0].mxu0
      %v1208 = vadd.f32 %v1081, %v1207
      %v1209 = vpop.f32.mrb[0].mxu0
      %1210 = vmatprep.mubr.f32.mxu0 0.0
      %v1211 = vand.u32 %v809, 4294901760
      %v1212 = vsub.f32 %v809, %v1211
      %1213 = vmatmul.mubr.f32.gmra.mrb[0].mxu0 %v1212
      %v1214 = vpop.f32.mrb[0].mxu0
      %v1215 = vadd.f32 %v1087, %v1214
      %v1216 = vpop.f32.mrb[0].mxu0
      %1217 = vmatprep.mubr.f32.mxu0 0.0
      %v1218 = vand.u32 %v812, 4294901760
      %v1219 = vsub.f32 %v812, %v1218
      %1220 = vmatmul.mubr.f32.gmra.mrb[0].mxu0 %v1219
      %v1221 = vpop.f32.mrb[0].mxu0
      %v1222 = vadd.f32 %v1093, %v1221
      %v1223 = vpop.f32.mrb[0].mxu0
      %1224 = vdwg.mxu0
      %1225 = vmatprep.subr.mxu0 0.0
      %v1226 = vand.u32 %v760, 4294901760
      %1227 = vmatpush1.msra.mxu0 %v1226
      %1228 = vmatprep.subr.mxu0 0.0
      %v1229 = vand.u32 %v766, 4294901760
      %1230 = vmatpush1.msra.mxu0 %v1229
      %1231 = vmatprep.subr.mxu0 0.0
      %v1232 = vand.u32 %v772, 4294901760
      %1233 = vmatpush1.msra.mxu0 %v1232
      %1234 = vmatprep.subr.mxu0 0.0
      %v1235 = vand.u32 %v778, 4294901760
      %1236 = vmatpush1.msra.mxu0 %v1235
      %1237 = vmatprep.subr.mxu0 0.0
      %1238 = vmatpush1.msra.mxu0 0.0
      %1239 = vmatprep.subr.mxu0 0.0
      %1240 = vmatpush1.msra.mxu0 0.0
      %1241 = vmatprep.subr.mxu0 0.0
      %1242 = vmatpush1.msra.mxu0 0.0
      %1243 = vmatprep.subr.mxu0 0.0
      %1244 = vmatpush1.msra.mxu0 0.0
      %1245 = vmatprep.subr.mxu0 0.0
      %1246 = vmatpush1.msra.mxu0 0.0
      %1247 = vmatprep.subr.mxu0 0.0
      %1248 = vmatpush1.msra.mxu0 0.0
      %1249 = vmatprep.subr.mxu0 0.0
      %1250 = vmatpush1.msra.mxu0 0.0
      %1251 = vmatprep.subr.mxu0 0.0
      %1252 = vmatpush1.msra.mxu0 0.0
      %1253 = vmatprep.subr.mxu0 0.0
      %1254 = vmatpush1.msra.mxu0 0.0
      %1255 = vmatprep.subr.mxu0 0.0
      %1256 = vmatpush1.msra.mxu0 0.0
      %1257 = vmatprep.subr.mxu0 0.0
      %1258 = vmatpush1.msra.mxu0 0.0
      %1259 = vmatprep.subr.mxu0 0.0
      %1260 = vmatpush1.msra.mxu0 0.0
      %1261 = vmatprep.subr.mxu0 0.0
      %1262 = vmatpush1.msra.mxu0 0.0
      %1263 = vmatprep.subr.mxu0 0.0
      %1264 = vmatpush1.msra.mxu0 0.0
      %1265 = vmatprep.subr.mxu0 0.0
      %1266 = vmatpush1.msra.mxu0 0.0
      %1267 = vmatprep.subr.mxu0 0.0
      %1268 = vmatpush1.msra.mxu0 0.0
      %1269 = vmatprep.subr.mxu0 0.0
      %1270 = vmatpush1.msra.mxu0 0.0
      %1271 = vmatprep.subr.mxu0 0.0
      %1272 = vmatpush1.msra.mxu0 0.0
      %1273 = vmatprep.subr.mxu0 0.0
      %1274 = vmatpush1.msra.mxu0 0.0
      %1275 = vmatprep.subr.mxu0 0.0
      %1276 = vmatpush1.msra.mxu0 0.0
      %1277 = vmatprep.subr.mxu0 0.0
      %1278 = vmatpush1.msra.mxu0 0.0
      %1279 = vmatprep.subr.mxu0 0.0
      %1280 = vmatpush1.msra.mxu0 0.0
      %1281 = vmatprep.subr.mxu0 0.0
      %1282 = vmatpush1.msra.mxu0 0.0
      %1283 = vmatprep.subr.mxu0 0.0
      %1284 = vmatpush1.msra.mxu0 0.0
      %1285 = vmatprep.subr.mxu0 0.0
      %1286 = vmatpush1.msra.mxu0 0.0
      %1287 = vmatprep.subr.mxu0 0.0
      %1288 = vmatpush1.msra.mxu0 0.0
      %1289 = vmatprep.subr.mxu0 0.0
      %1290 = vmatpush1.msra.mxu0 0.0
      %1291 = vmatprep.subr.mxu0 0.0
      %1292 = vmatpush1.msra.mxu0 0.0
      %1293 = vmatprep.mubr.f32.mxu0 0.0
      %v1294 = vand.u32 %v791, 4294901760
      %v1295 = vsub.f32 %v791, %v1294
      %v1296 = vand.u32 %v1295, 4294901760
      %1297 = vmatmul.mubr.f32.gmra.mrb[0].mxu0 %v1296
      %v1298 = vpop.f32.mrb[0].mxu0
      %v1299 = vadd.f32 %v1173, %v1298
      %v1300 = vpop.f32.mrb[0].mxu0
      %1301 = vmatprep.mubr.f32.mxu0 0.0
      %v1302 = vand.u32 %v794, 4294901760
      %v1303 = vsub.f32 %v794, %v1302
      %v1304 = vand.u32 %v1303, 4294901760
      %1305 = vmatmul.mubr.f32.gmra.mrb[0].mxu0 %v1304
      %v1306 = vpop.f32.mrb[0].mxu0
      %v1307 = vadd.f32 %v1180, %v1306
      %v1308 = vpop.f32.mrb[0].mxu0
      %1309 = vmatprep.mubr.f32.mxu0 0.0
      %v1310 = vand.u32 %v797, 4294901760
      %v1311 = vsub.f32 %v797, %v1310
      %v1312 = vand.u32 %v1311, 4294901760
      %1313 = vmatmul.mubr.f32.gmra.mrb[0].mxu0 %v1312
      %v1314 = vpop.f32.mrb[0].mxu0
      %v1315 = vadd.f32 %v1187, %v1314
      %v1316 = vpop.f32.mrb[0].mxu0
      %1317 = vmatprep.mubr.f32.mxu0 0.0
      %v1318 = vand.u32 %v800, 4294901760
      %v1319 = vsub.f32 %v800, %v1318
      %v1320 = vand.u32 %v1319, 4294901760
      %1321 = vmatmul.mubr.f32.gmra.mrb[0].mxu0 %v1320
      %v1322 = vpop.f32.mrb[0].mxu0
      %v1323 = vadd.f32 %v1194, %v1322
      %v1324 = vpop.f32.mrb[0].mxu0
      %1325 = vmatprep.mubr.f32.mxu0 0.0
      %v1326 = vand.u32 %v803, 4294901760
      %v1327 = vsub.f32 %v803, %v1326
      %v1328 = vand.u32 %v1327, 4294901760
      %1329 = vmatmul.mubr.f32.gmra.mrb[0].mxu0 %v1328
      %v1330 = vpop.f32.mrb[0].mxu0
      %v1331 = vadd.f32 %v1201, %v1330
      %v1332 = vpop.f32.mrb[0].mxu0
      %1333 = vmatprep.mubr.f32.mxu0 0.0
      %v1334 = vand.u32 %v806, 4294901760
      %v1335 = vsub.f32 %v806, %v1334
      %v1336 = vand.u32 %v1335, 4294901760
      %1337 = vmatmul.mubr.f32.gmra.mrb[0].mxu0 %v1336
      %v1338 = vpop.f32.mrb[0].mxu0
      %v1339 = vadd.f32 %v1208, %v1338
      %v1340 = vpop.f32.mrb[0].mxu0
      %1341 = vmatprep.mubr.f32.mxu0 0.0
      %v1342 = vand.u32 %v809, 4294901760
      %v1343 = vsub.f32 %v809, %v1342
      %v1344 = vand.u32 %v1343, 4294901760
      %1345 = vmatmul.mubr.f32.gmra.mrb[0].mxu0 %v1344
      %v1346 = vpop.f32.mrb[0].mxu0
      %v1347 = vadd.f32 %v1215, %v1346
      %v1348 = vpop.f32.mrb[0].mxu0
      %1349 = vmatprep.mubr.f32.mxu0 0.0
      %v1350 = vand.u32 %v812, 4294901760
      %v1351 = vsub.f32 %v812, %v1350
      %v1352 = vand.u32 %v1351, 4294901760
      %1353 = vmatmul.mubr.f32.gmra.mrb[0].mxu0 %v1352
      %v1354 = vpop.f32.mrb[0].mxu0
      %v1355 = vadd.f32 %v1222, %v1354
      %v1356 = vpop.f32.mrb[0].mxu0
      %1357 = vdwg.mxu0
      %1358 = vmatprep.subr.mxu0 0.0
      %v1359 = vand.u32 %v760, 4294901760
      %v1360 = vsub.f32 %v760, %v1359
      %v1361 = vand.u32 %v1360, 4294901760
      %1362 = vmatpush1.msra.mxu0 %v1361
      %1363 = vmatprep.subr.mxu0 0.0
      %v1364 = vand.u32 %v766, 4294901760
      %v1365 = vsub.f32 %v766, %v1364
      %v1366 = vand.u32 %v1365, 4294901760
      %1367 = vmatpush1.msra.mxu0 %v1366
      %1368 = vmatprep.subr.mxu0 0.0
      %v1369 = vand.u32 %v772, 4294901760
      %v1370 = vsub.f32 %v772, %v1369
      %v1371 = vand.u32 %v1370, 4294901760
      %1372 = vmatpush1.msra.mxu0 %v1371
      %1373 = vmatprep.subr.mxu0 0.0
      %v1374 = vand.u32 %v778, 4294901760
      %v1375 = vsub.f32 %v778, %v1374
      %v1376 = vand.u32 %v1375, 4294901760
      %1377 = vmatpush1.msra.mxu0 %v1376
      %1378 = vmatprep.subr.mxu0 0.0
      %1379 = vmatpush1.msra.mxu0 0.0
      %1380 = vmatprep.subr.mxu0 0.0
      %1381 = vmatpush1.msra.mxu0 0.0
      %1382 = vmatprep.subr.mxu0 0.0
      %1383 = vmatpush1.msra.mxu0 0.0
      %1384 = vmatprep.subr.mxu0 0.0
      %1385 = vmatpush1.msra.mxu0 0.0
      %1386 = vmatprep.subr.mxu0 0.0
      %1387 = vmatpush1.msra.mxu0 0.0
      %1388 = vmatprep.subr.mxu0 0.0
      %1389 = vmatpush1.msra.mxu0 0.0
      %1390 = vmatprep.subr.mxu0 0.0
      %1391 = vmatpush1.msra.mxu0 0.0
      %1392 = vmatprep.subr.mxu0 0.0
      %1393 = vmatpush1.msra.mxu0 0.0
      %1394 = vmatprep.subr.mxu0 0.0
      %1395 = vmatpush1.msra.mxu0 0.0
      %1396 = vmatprep.subr.mxu0 0.0
      %1397 = vmatpush1.msra.mxu0 0.0
      %1398 = vmatprep.subr.mxu0 0.0
      %1399 = vmatpush1.msra.mxu0 0.0
      %1400 = vmatprep.subr.mxu0 0.0
      %1401 = vmatpush1.msra.mxu0 0.0
      %1402 = vmatprep.subr.mxu0 0.0
      %1403 = vmatpush1.msra.mxu0 0.0
      %1404 = vmatprep.subr.mxu0 0.0
      %1405 = vmatpush1.msra.mxu0 0.0
      %1406 = vmatprep.subr.mxu0 0.0
      %1407 = vmatpush1.msra.mxu0 0.0
      %1408 = vmatprep.subr.mxu0 0.0
      %1409 = vmatpush1.msra.mxu0 0.0
      %1410 = vmatprep.subr.mxu0 0.0
      %1411 = vmatpush1.msra.mxu0 0.0
      %1412 = vmatprep.subr.mxu0 0.0
      %1413 = vmatpush1.msra.mxu0 0.0
      %1414 = vmatprep.subr.mxu0 0.0
      %1415 = vmatpush1.msra.mxu0 0.0
      %1416 = vmatprep.subr.mxu0 0.0
      %1417 = vmatpush1.msra.mxu0 0.0
      %1418 = vmatprep.subr.mxu0 0.0
      %1419 = vmatpush1.msra.mxu0 0.0
      %1420 = vmatprep.subr.mxu0 0.0
      %1421 = vmatpush1.msra.mxu0 0.0
      %1422 = vmatprep.subr.mxu0 0.0
      %1423 = vmatpush1.msra.mxu0 0.0
      %1424 = vmatprep.subr.mxu0 0.0
      %1425 = vmatpush1.msra.mxu0 0.0
      %1426 = vmatprep.subr.mxu0 0.0
      %1427 = vmatpush1.msra.mxu0 0.0
      %1428 = vmatprep.subr.mxu0 0.0
      %1429 = vmatpush1.msra.mxu0 0.0
      %1430 = vmatprep.subr.mxu0 0.0
      %1431 = vmatpush1.msra.mxu0 0.0
      %1432 = vmatprep.subr.mxu0 0.0
      %1433 = vmatpush1.msra.mxu0 0.0
      %1434 = vmatprep.mubr.f32.mxu0 0.0
      %v1435 = vand.u32 %v791, 4294901760
      %1436 = vmatmul.mubr.f32.gmra.mrb[0].mxu0 %v1435
      %v1437 = vpop.f32.mrb[0].mxu0
      %v1438 = vadd.f32 %v1299, %v1437
      %v1439 = vpop.f32.mrb[0].mxu0
      %1440 = vmatprep.mubr.f32.mxu0 0.0
      %v1441 = vand.u32 %v794, 4294901760
      %1442 = vmatmul.mubr.f32.gmra.mrb[0].mxu0 %v1441
      %v1443 = vpop.f32.mrb[0].mxu0
      %v1444 = vadd.f32 %v1307, %v1443
      %v1445 = vpop.f32.mrb[0].mxu0
      %1446 = vmatprep.mubr.f32.mxu0 0.0
      %v1447 = vand.u32 %v797, 4294901760
      %1448 = vmatmul.mubr.f32.gmra.mrb[0].mxu0 %v1447
      %v1449 = vpop.f32.mrb[0].mxu0
      %v1450 = vadd.f32 %v1315, %v1449
      %v1451 = vpop.f32.mrb[0].mxu0
      %1452 = vmatprep.mubr.f32.mxu0 0.0
      %v1453 = vand.u32 %v800, 4294901760
      %1454 = vmatmul.mubr.f32.gmra.mrb[0].mxu0 %v1453
      %v1455 = vpop.f32.mrb[0].mxu0
      %v1456 = vadd.f32 %v1323, %v1455
      %v1457 = vpop.f32.mrb[0].mxu0
      %1458 = vmatprep.mubr.f32.mxu0 0.0
      %v1459 = vand.u32 %v803, 4294901760
      %1460 = vmatmul.mubr.f32.gmra.mrb[0].mxu0 %v1459
      %v1461 = vpop.f32.mrb[0].mxu0
      %v1462 = vadd.f32 %v1331, %v1461
      %v1463 = vpop.f32.mrb[0].mxu0
      %1464 = vmatprep.mubr.f32.mxu0 0.0
      %v1465 = vand.u32 %v806, 4294901760
      %1466 = vmatmul.mubr.f32.gmra.mrb[0].mxu0 %v1465
      %v1467 = vpop.f32.mrb[0].mxu0
      %v1468 = vadd.f32 %v1339, %v1467
      %v1469 = vpop.f32.mrb[0].mxu0
      %1470 = vmatprep.mubr.f32.mxu0 0.0
      %v1471 = vand.u32 %v809, 4294901760
      %1472 = vmatmul.mubr.f32.gmra.mrb[0].mxu0 %v1471
      %v1473 = vpop.f32.mrb[0].mxu0
      %v1474 = vadd.f32 %v1347, %v1473
      %v1475 = vpop.f32.mrb[0].mxu0
      %1476 = vmatprep.mubr.f32.mxu0 0.0
      %v1477 = vand.u32 %v812, 4294901760
      %1478 = vmatmul.mubr.f32.gmra.mrb[0].mxu0 %v1477
      %v1479 = vpop.f32.mrb[0].mxu0
      %v1480 = vadd.f32 %v1355, %v1479
      %v1481 = vpop.f32.mrb[0].mxu0
      %1482 = vdwg.mxu0
      %1483 = vmatprep.subr.mxu0 0.0
      %v1484 = vand.u32 %v760, 4294901760
      %1485 = vmatpush1.msra.mxu0 %v1484
      %1486 = vmatprep.subr.mxu0 0.0
      %v1487 = vand.u32 %v766, 4294901760
      %1488 = vmatpush1.msra.mxu0 %v1487
      %1489 = vmatprep.subr.mxu0 0.0
      %v1490 = vand.u32 %v772, 4294901760
      %1491 = vmatpush1.msra.mxu0 %v1490
      %1492 = vmatprep.subr.mxu0 0.0
      %v1493 = vand.u32 %v778, 4294901760
      %1494 = vmatpush1.msra.mxu0 %v1493
      %1495 = vmatprep.subr.mxu0 0.0
      %1496 = vmatpush1.msra.mxu0 0.0
      %1497 = vmatprep.subr.mxu0 0.0
      %1498 = vmatpush1.msra.mxu0 0.0
      %1499 = vmatprep.subr.mxu0 0.0
      %1500 = vmatpush1.msra.mxu0 0.0
      %1501 = vmatprep.subr.mxu0 0.0
      %1502 = vmatpush1.msra.mxu0 0.0
      %1503 = vmatprep.subr.mxu0 0.0
      %1504 = vmatpush1.msra.mxu0 0.0
      %1505 = vmatprep.subr.mxu0 0.0
      %1506 = vmatpush1.msra.mxu0 0.0
      %1507 = vmatprep.subr.mxu0 0.0
      %1508 = vmatpush1.msra.mxu0 0.0
      %1509 = vmatprep.subr.mxu0 0.0
      %1510 = vmatpush1.msra.mxu0 0.0
      %1511 = vmatprep.subr.mxu0 0.0
      %1512 = vmatpush1.msra.mxu0 0.0
      %1513 = vmatprep.subr.mxu0 0.0
      %1514 = vmatpush1.msra.mxu0 0.0
      %1515 = vmatprep.subr.mxu0 0.0
      %1516 = vmatpush1.msra.mxu0 0.0
      %1517 = vmatprep.subr.mxu0 0.0
      %1518 = vmatpush1.msra.mxu0 0.0
      %1519 = vmatprep.subr.mxu0 0.0
      %1520 = vmatpush1.msra.mxu0 0.0
      %1521 = vmatprep.subr.mxu0 0.0
      %1522 = vmatpush1.msra.mxu0 0.0
      %1523 = vmatprep.subr.mxu0 0.0
      %1524 = vmatpush1.msra.mxu0 0.0
      %1525 = vmatprep.subr.mxu0 0.0
      %1526 = vmatpush1.msra.mxu0 0.0
      %1527 = vmatprep.subr.mxu0 0.0
      %1528 = vmatpush1.msra.mxu0 0.0
      %1529 = vmatprep.subr.mxu0 0.0
      %1530 = vmatpush1.msra.mxu0 0.0
      %1531 = vmatprep.subr.mxu0 0.0
      %1532 = vmatpush1.msra.mxu0 0.0
      %1533 = vmatprep.subr.mxu0 0.0
      %1534 = vmatpush1.msra.mxu0 0.0
      %1535 = vmatprep.subr.mxu0 0.0
      %1536 = vmatpush1.msra.mxu0 0.0
      %1537 = vmatprep.subr.mxu0 0.0
      %1538 = vmatpush1.msra.mxu0 0.0
      %1539 = vmatprep.subr.mxu0 0.0
      %1540 = vmatpush1.msra.mxu0 0.0
      %1541 = vmatprep.subr.mxu0 0.0
      %1542 = vmatpush1.msra.mxu0 0.0
      %1543 = vmatprep.subr.mxu0 0.0
      %1544 = vmatpush1.msra.mxu0 0.0
      %1545 = vmatprep.subr.mxu0 0.0
      %1546 = vmatpush1.msra.mxu0 0.0
      %1547 = vmatprep.subr.mxu0 0.0
      %1548 = vmatpush1.msra.mxu0 0.0
      %1549 = vmatprep.subr.mxu0 0.0
      %1550 = vmatpush1.msra.mxu0 0.0
      %1551 = vmatprep.mubr.f32.mxu0 0.0
      %v1552 = vand.u32 %v791, 4294901760
      %1553 = vmatmul.mubr.f32.gmra.mrb[0].mxu0 %v1552
      %v1554 = vpop.f32.mrb[0].mxu0
      %v1555 = vadd.f32 %v1438, %v1554
      %v1556 = vpop.f32.mrb[0].mxu0
      %1557 = vmatprep.mubr.f32.mxu0 0.0
      %v1558 = vand.u32 %v794, 4294901760
      %1559 = vmatmul.mubr.f32.gmra.mrb[0].mxu0 %v1558
      %v1560 = vpop.f32.mrb[0].mxu0
      %v1561 = vadd.f32 %v1444, %v1560
      %v1562 = vpop.f32.mrb[0].mxu0
      %1563 = vmatprep.mubr.f32.mxu0 0.0
      %v1564 = vand.u32 %v797, 4294901760
      %1565 = vmatmul.mubr.f32.gmra.mrb[0].mxu0 %v1564
      %v1566 = vpop.f32.mrb[0].mxu0
      %v1567 = vadd.f32 %v1450, %v1566
      %v1568 = vpop.f32.mrb[0].mxu0
      %1569 = vmatprep.mubr.f32.mxu0 0.0
      %v1570 = vand.u32 %v800, 4294901760
      %1571 = vmatmul.mubr.f32.gmra.mrb[0].mxu0 %v1570
      %v1572 = vpop.f32.mrb[0].mxu0
      %v1573 = vadd.f32 %v1456, %v1572
      %v1574 = vpop.f32.mrb[0].mxu0
      %1575 = vmatprep.mubr.f32.mxu0 0.0
      %v1576 = vand.u32 %v803, 4294901760
      %1577 = vmatmul.mubr.f32.gmra.mrb[0].mxu0 %v1576
      %v1578 = vpop.f32.mrb[0].mxu0
      %v1579 = vadd.f32 %v1462, %v1578
      %v1580 = vpop.f32.mrb[0].mxu0
      %1581 = vmatprep.mubr.f32.mxu0 0.0
      %v1582 = vand.u32 %v806, 4294901760
      %1583 = vmatmul.mubr.f32.gmra.mrb[0].mxu0 %v1582
      %v1584 = vpop.f32.mrb[0].mxu0
      %v1585 = vadd.f32 %v1468, %v1584
      %v1586 = vpop.f32.mrb[0].mxu0
      %1587 = vmatprep.mubr.f32.mxu0 0.0
      %v1588 = vand.u32 %v809, 4294901760
      %1589 = vmatmul.mubr.f32.gmra.mrb[0].mxu0 %v1588
      %v1590 = vpop.f32.mrb[0].mxu0
      %v1591 = vadd.f32 %v1474, %v1590
      %v1592 = vpop.f32.mrb[0].mxu0
      %1593 = vmatprep.mubr.f32.mxu0 0.0
      %v1594 = vand.u32 %v812, 4294901760
      %1595 = vmatmul.mubr.f32.gmra.mrb[0].mxu0 %v1594
      %v1596 = vpop.f32.mrb[0].mxu0
      %v1597 = vadd.f32 %v1480, %v1596
      %v1598 = vpop.f32.mrb[0].mxu0
      %1599 = vdwg.mxu0
      %1600 = vst.msk [vmem:[%s172] sm:$0xff] %vm789, %v1555
      %1601 = vst.msk [vmem:[%s172 + $0x8] sm:$0xff] %vm789, %v1561
      %1602 = vst.msk [vmem:[%s172 + $0x10] sm:$0xff] %vm789, %v1567
      %1603 = vst.msk [vmem:[%s172 + $0x18] sm:$0xff] %vm789, %v1573
      %1604 = vst.msk [vmem:[%s172 + $0x20] sm:$0xff] %vm789, %v1579
      %1605 = vst.msk [vmem:[%s172 + $0x28] sm:$0xff] %vm789, %v1585
      %1606 = vst.msk [vmem:[%s172 + $0x30] sm:$0xff] %vm789, %v1591
      %1607 = vst.msk [vmem:[%s172 + $0x38] sm:$0xff] %vm789, %v1597
      %s1608 = smul.u32 8, %s14
      %p1609 = scmp.lt.s32.totalorder %s1608, 31
      %s1610 = scalar_select %p1609, %s1608, 31
      %s1611 = smul.addr %s1610, 8
      %s1612 = scalar_lea.vmem %s3, %s1611
      // Predicated region
      $region33: #{tpu_custom_call.1} parent=31 // pred_check
        %p1613 = pneg %p100
      $region34: #{tpu_custom_call.1} parent=31 // pred_check_branch
        %1615 = sbr.rel (%p1613) target = $region36
      $region35: #{tpu_custom_call.1} parent=31 // pred_region
        %s1616 = smul.u32 8, %s14
      $region36: #{tpu_custom_call.1} parent=31 // pred_fallthru
        _
    $region32: #{tpu_custom_call.1} parent=5 // pred_fallthru
      _
    %p1617 = scmp.le.s32.totalorder 2, %s9
    // Predicated region
    $region37: #{tpu_custom_call.1} parent=5 // pred_check
      %p1618 = pneg %p1617
    $region38: #{tpu_custom_call.1} parent=5 // pred_check_branch
      %1620 = sbr.rel (%p1618) target = $region40
    $region39: #{tpu_custom_call.1} parent=5 // pred_region
      %s1621 = ssub.s32 %s9, 2
      // Predicated region
      $region41: #{tpu_custom_call.1} parent=39 // pred_check
        %p1622 = pneg %p106
      $region42: #{tpu_custom_call.1} parent=39 // pred_check_branch
        %1624 = sbr.rel (%p1622) target = $region44
      $region43: #{tpu_custom_call.1} parent=39 // pred_region
        %s1625 = smul.u32 8, %s15
        %p1626 = scmp.lt.s32.totalorder %s1625, 31
        %s1627 = scalar_select %p1626, %s1625, 31
        %s1628 = smul.addr %s1627, 8
        %s1629 = scalar_lea.vmem %s3, %s1628
      $region44: #{tpu_custom_call.1} parent=39 // pred_fallthru
        _
    $region40: #{tpu_custom_call.1} parent=5 // pred_fallthru
      _
  $region6: #{tpu_custom_call.1} parent=0 // loop_footer
    %s13 = sadd.s32 1, %s9
  $region7: #{tpu_custom_call.1} parent=0 // loop_footer_branch
    %8 = sbr.rel target = $region3
  $region8: #{tpu_custom_call.1} parent=0 // loop_exit
    _

</llo_original>
